<compile_context>
chip_gen: v6e
topology: v6e:2x2x1
jax: 0.10.0
libtpu: 0.0.40
codegen_flags: <defaults>
</compile_context>

<pallas_src>
import math

import jax
import jax.numpy as jnp
from jax.experimental import pallas as pl
from jax.experimental.pallas import tpu as pltpu

# ---------------- scaled-down DeiT-base config ----------------
IMG = 32            # (real model: 224)
PATCH = 16
CHANNELS = 3
HIDDEN = 32         # (real model: 768)
HEADS = 2           # (real model: 12)
HEAD_DIM = HIDDEN // HEADS
INTERMEDIATE = 64   # (real model: 3072)
LAYERS = 2          # (real model: 12)
NCLASSES = 500
NCLASSES_PAD = 512  # lane-dense (multiple of 128) classifier output
LN_EPS = 1e-12
NUM_PATCHES = (IMG // PATCH) ** 2
SEQ = NUM_PATCHES + 2            # CLS token + distillation token + patches
CPP = CHANNELS * PATCH * PATCH   # flattened patch length


# ---------------- small helpers used inside the kernel ----------------
def _layernorm(x, g, b):
    mu = jnp.mean(x, axis=-1, keepdims=True)
    var = jnp.mean(jnp.square(x - mu), axis=-1, keepdims=True)
    return (x - mu) * jax.lax.rsqrt(var + LN_EPS) * g + b


def _gelu(x):
    # TODO(synk): HF DeiT uses exact erf GELU; tanh approximation used here for
    # robust Mosaic lowering — numerically very close (~1e-3 rel).
    c = math.sqrt(2.0 / math.pi)
    return 0.5 * x * (1.0 + jnp.tanh(c * (x + 0.044715 * x * x * x)))


# ---------------- the fused per-(image, layer) Pallas kernel ----------------
def deit_fwd_kernel(patches_ref, pw_ref, bias_ref,
                    ln1g_ref, ln1b_ref, qkvw_ref, qkvb_ref, ow_ref, ob_ref,
                    ln2g_ref, ln2b_ref, w1_ref, b1_ref, w2_ref, b2_ref,
                    lnfg_ref, lnfb_ref, cw_ref, cb_ref,
                    o_ref, h_ref):
    f32, bf16 = jnp.float32, jnp.bfloat16
    l = pl.program_id(1)
    D = HIDDEN

    # ---- embeddings: only at the first layer step of this image ----
    # patches_ref already has 2 leading zero rows per image, so the matmul
    # directly emits (SEQ, D); bias_ref carries token embeds + pos + conv bias.
    @pl.when(l == 0)
    def _():
        pe = jnp.dot(patches_ref[0], pw_ref[...], preferred_element_type=f32)
        h_ref[...] = pe + bias_ref[...]

    h = h_ref[...]                                            # (SEQ, D) f32

    # ---- self-attention block (pre-LN), fused QKV projection ----
    hn = _layernorm(h, ln1g_ref[0], ln1b_ref[0]).astype(bf16)
    qkv = jnp.dot(hn, qkvw_ref[0], preferred_element_type=f32) + qkvb_ref[0]
    scale = 1.0 / math.sqrt(HEAD_DIM)

    ctxs = []
    for hh in range(HEADS):                                   # static unroll
        s0 = hh * HEAD_DIM
        q = qkv[:, s0:s0 + HEAD_DIM].astype(bf16)
        k = qkv[:, D + s0:D + s0 + HEAD_DIM].astype(bf16)
        v = qkv[:, 2 * D + s0:2 * D + s0 + HEAD_DIM].astype(bf16)
        s = jax.lax.dot_general(q, k, (((1,), (1,)), ((), ())),
                                preferred_element_type=f32) * scale   # (S, S)
        s = s - jnp.max(s, axis=-1, keepdims=True)
        p = jnp.exp(s)
        p = p / jnp.sum(p, axis=-1, keepdims=True)
        ctxs.append(jnp.dot(p.astype(bf16), v, preferred_element_type=f32))

    ctx = jnp.concatenate(ctxs, axis=-1).astype(bf16)         # (SEQ, D)
    attn_out = jnp.dot(ctx, ow_ref[0], preferred_element_type=f32) + ob_ref[0]
    h = h + attn_out

    # ---- MLP block (pre-LN) ----
    hn2 = _layernorm(h, ln2g_ref[0], ln2b_ref[0]).astype(bf16)
    m = jnp.dot(hn2, w1_ref[0], preferred_element_type=f32) + b1_ref[0]
    m = _gelu(m).astype(bf16)
    h = h + jnp.dot(m, w2_ref[0], preferred_element_type=f32) + b2_ref[0]
    h_ref[...] = h

    # ---- final LayerNorm on CLS row + classifier, only at the last layer ----
    @pl.when(l == LAYERS - 1)
    def _():
        cls = h[0:1, :]
        cf = _layernorm(cls, lnfg_ref[...], lnfb_ref[...]).astype(bf16)
        o_ref[0] = jnp.dot(cf, cw_ref[...], preferred_element_type=f32) + cb_ref[...]


# ---------------- glue: patch extraction + single pallas_call ----------------
def extract_patches(x):
    # x: (B, C, H, W) NCHW -> (B, num_patches, C*P*P), flattened in (C, ph, pw)
    # order, matching a flattened Conv2d(kernel=stride=P) weight.
    B, C, H, W = x.shape
    hp, wp = H // PATCH, W // PATCH
    x = x.reshape(B, C, hp, PATCH, wp, PATCH)
    x = x.transpose(0, 2, 4, 1, 3, 5)
    return x.reshape(B, hp * wp, C * PATCH * PATCH)


def deit_forward(x, pp):
    B = x.shape[0]
    patches = extract_patches(x)                               # (B, NP, CPP)
    # Prepend two zero "token rows" per image so the patch-embed matmul emits
    # the full (SEQ, D) slab with no in-kernel concat.
    patches_ext = jnp.concatenate(
        [jnp.zeros((B, 2, CPP), patches.dtype), patches], axis=1
    ).astype(jnp.bfloat16)                                     # (B, SEQ, CPP)

    def wspec(shape):     # per-layer stacked weight: stream block l
        return pl.BlockSpec((1,) + tuple(shape[1:]),
                            lambda b, l: (l,) + (0,) * (len(shape) - 1))

    def cspec(shape):     # constant (layer-independent) weight: resident
        return pl.BlockSpec(tuple(shape), lambda b, l: (0,) * len(shape))

    in_specs = [
        pl.BlockSpec((1, SEQ, CPP), lambda b, l: (b, 0, 0)),   # patches
        cspec(pp['patch_w'].shape),
        cspec(pp['seq_bias'].shape),
        wspec(pp['ln1_g'].shape), wspec(pp['ln1_b'].shape),
        wspec(pp['qkv_w'].shape), wspec(pp['qkv_b'].shape),
        wspec(pp['o_w'].shape),   wspec(pp['o_b'].shape),
        wspec(pp['ln2_g'].shape), wspec(pp['ln2_b'].shape),
        wspec(pp['w1'].shape),    wspec(pp['b1'].shape),
        wspec(pp['w2'].shape),    wspec(pp['b2'].shape),
        cspec(pp['lnf_g'].shape), cspec(pp['lnf_b'].shape),
        cspec(pp['cls_w'].shape), cspec(pp['cls_b'].shape),
    ]
    out_spec = pl.BlockSpec((1, 1, NCLASSES_PAD), lambda b, l: (b, 0, 0))

    logits_pad = pl.pallas_call(
        deit_fwd_kernel,
        grid=(B, LAYERS),
        out_shape=jax.ShapeDtypeStruct((B, 1, NCLASSES_PAD), jnp.float32),
        in_specs=in_specs,
        out_specs=out_spec,
        scratch_shapes=[pltpu.VMEM((SEQ, HIDDEN), jnp.float32)],  # resident h
        compiler_params=pltpu.CompilerParams(
            dimension_semantics=("parallel", "arbitrary"),
            vmem_limit_bytes=32 * 1024 * 1024),
    )(patches_ext, pp['patch_w'], pp['seq_bias'],
      pp['ln1_g'], pp['ln1_b'], pp['qkv_w'], pp['qkv_b'], pp['o_w'], pp['o_b'],
      pp['ln2_g'], pp['ln2_b'], pp['w1'], pp['b1'], pp['w2'], pp['b2'],
      pp['lnf_g'], pp['lnf_b'], pp['cls_w'], pp['cls_b'])

    return logits_pad[:, 0, :NCLASSES]


# ---------------- deterministic parameter init (PyTorch-like layout) ----------
def _nrm(k, shape, scale=0.02):
    return (scale * jax.random.normal(k, shape)).astype(jnp.float32)


def init_layer(key):
    ks = jax.random.split(key, 6)
    D, I = HIDDEN, INTERMEDIATE
    z = lambda s: jnp.zeros(s, jnp.float32)
    return {
        'ln1_g': jnp.ones((1, D), jnp.float32), 'ln1_b': z((1, D)),
        'q_w': _nrm(ks[0], (D, D)), 'q_b': z((1, D)),
        'k_w': _nrm(ks[1], (D, D)), 'k_b': z((1, D)),
        'v_w': _nrm(ks[2], (D, D)), 'v_b': z((1, D)),
        'o_w': _nrm(ks[3], (D, D)), 'o_b': z((1, D)),
        'ln2_g': jnp.ones((1, D), jnp.float32), 'ln2_b': z((1, D)),
        'w1': _nrm(ks[4], (D, I)), 'b1': z((1, I)),
        'w2': _nrm(ks[5], (I, D)), 'b2': z((1, D)),
    }


def init_params(key):
    ks = jax.random.split(key, 7 + LAYERS)
    bound = 1.0 / math.sqrt(HIDDEN)
    return {
        'patch_w': _nrm(ks[0], (CPP, HIDDEN)),
        'patch_b': jnp.zeros((1, HIDDEN), jnp.float32),
        'cls_token': _nrm(ks[1], (1, 1, HIDDEN)),
        'dist_token': _nrm(ks[2], (1, 1, HIDDEN)),      # DeiT distillation token
        'pos_embed': _nrm(ks[3], (1, SEQ, HIDDEN)),
        'ln_g': jnp.ones((1, HIDDEN), jnp.float32),
        'ln_b': jnp.zeros((1, HIDDEN), jnp.float32),
        # nn.Linear(hidden, nclasses) default init: U(-1/sqrt(D), 1/sqrt(D))
        'cls_w': jax.random.uniform(ks[4], (HIDDEN, NCLASSES), jnp.float32,
                                    -bound, bound),
        'cls_b': jax.random.uniform(ks[5], (1, NCLASSES), jnp.float32,
                                    -bound, bound),
        'layers': [init_layer(k) for k in jax.random.split(ks[-1], LAYERS)],
    }


def pack_params(p):
    """One-time host-side packing: stack per-layer weights as (L, ...), fuse
    Q|K|V into one (D, 3D) slab, pre-bake the (SEQ, D) token/pos/conv-bias
    addend, cast MXU operands to bf16, lane-pad the classifier."""
    bf = jnp.bfloat16
    L = p['layers']

    def stackv(key):      # per-layer (1, dim) -> (LAYERS, 1, dim) f32
        return jnp.stack([lp[key] for lp in L], axis=0)

    def stackm(key):      # per-layer (in, out) -> (LAYERS, in, out) bf16
        return jnp.stack([lp[key] for lp in L], axis=0).astype(bf)

    pos = p['pos_embed'].reshape(SEQ, HIDDEN)
    seq_bias = jnp.concatenate(
        [p['cls_token'].reshape(1, HIDDEN) + pos[0:1],
         p['dist_token'].reshape(1, HIDDEN) + pos[1:2],
         pos[2:] + p['patch_b']], axis=0)                     # (SEQ, D) f32

    qkv_w = jnp.stack(
        [jnp.concatenate([lp['q_w'], lp['k_w'], lp['v_w']], axis=-1) for lp in L],
        axis=0).astype(bf)                                    # (L, D, 3D)
    qkv_b = jnp.stack(
        [jnp.concatenate([lp['q_b'], lp['k_b'], lp['v_b']], axis=-1) for lp in L],
        axis=0)                                               # (L, 1, 3D)

    pad = NCLASSES_PAD - NCLASSES
    return {
        'patch_w': p['patch_w'].astype(bf),
        'seq_bias': seq_bias,
        'ln1_g': stackv('ln1_g'), 'ln1_b': stackv('ln1_b'),
        'qkv_w': qkv_w, 'qkv_b': qkv_b,
        'o_w': stackm('o_w'), 'o_b': stackv('o_b'),
        'ln2_g': stackv('ln2_g'), 'ln2_b': stackv('ln2_b'),
        'w1': stackm('w1'), 'b1': stackv('b1'),
        'w2': stackm('w2'), 'b2': stackv('b2'),
        'lnf_g': p['ln_g'], 'lnf_b': p['ln_b'],
        'cls_w': jnp.pad(p['cls_w'], ((0, 0), (0, pad))).astype(bf),
        'cls_b': jnp.pad(p['cls_b'], ((0, 0), (0, pad))),
    }


if __name__ == "__main__":
    key = jax.random.PRNGKey(0)
    pkey, xkey = jax.random.split(key)
    params = init_params(pkey)
    packed = pack_params(params)

    x = jax.random.normal(xkey, (2, CHANNELS, IMG, IMG), dtype=jnp.float32)

    fwd = jax.jit(deit_forward)
    logits = fwd(x, packed)
    jax.block_until_ready(logits)
    assert logits.shape == (2, NCLASSES) and logits.dtype == jnp.float32
    print("KERNEL_OK")
</pallas_src>

<mosaic_0001>
module attributes {stable_mosaic.version = 11 : i64} {
  func.func @deit_fwd_kernel(%arg0: i32, %arg1: i32, %arg2: memref<1x6x768xbf16, #tpu.memory_space<vmem>>, %arg3: memref<768x32xbf16, #tpu.memory_space<vmem>>, %arg4: memref<6x32xf32, #tpu.memory_space<vmem>>, %arg5: memref<1x1x32xf32, #tpu.memory_space<vmem>>, %arg6: memref<1x1x32xf32, #tpu.memory_space<vmem>>, %arg7: memref<1x32x96xbf16, #tpu.memory_space<vmem>>, %arg8: memref<1x1x96xf32, #tpu.memory_space<vmem>>, %arg9: memref<1x32x32xbf16, #tpu.memory_space<vmem>>, %arg10: memref<1x1x32xf32, #tpu.memory_space<vmem>>, %arg11: memref<1x1x32xf32, #tpu.memory_space<vmem>>, %arg12: memref<1x1x32xf32, #tpu.memory_space<vmem>>, %arg13: memref<1x32x64xbf16, #tpu.memory_space<vmem>>, %arg14: memref<1x1x64xf32, #tpu.memory_space<vmem>>, %arg15: memref<1x64x32xbf16, #tpu.memory_space<vmem>>, %arg16: memref<1x1x32xf32, #tpu.memory_space<vmem>>, %arg17: memref<1x32xf32, #tpu.memory_space<vmem>>, %arg18: memref<1x32xf32, #tpu.memory_space<vmem>>, %arg19: memref<32x512xbf16, #tpu.memory_space<vmem>>, %arg20: memref<1x512xf32, #tpu.memory_space<vmem>>, %arg21: memref<1x1x512xf32, #tpu.memory_space<vmem>>, %arg22: memref<6x32xf32, #tpu.memory_space<vmem>>) attributes {dimension_semantics = [#tpu.dimension_semantics<parallel>, #tpu.dimension_semantics<arbitrary>], iteration_bounds = array<i64: 2, 2>, scalar_prefetch = 0 : i64, scratch_operands = 1 : i64, tpu.core_type = #tpu.core_type<tc>, window_params = [{transform_indices = @transform_0, window_bounds = array<i64: 1, 6, 768>}, {pipeline_mode = #tpu.pipeline_mode<synchronous>, transform_indices = @transform_1, window_bounds = array<i64: 768, 32>}, {pipeline_mode = #tpu.pipeline_mode<synchronous>, transform_indices = @transform_2, window_bounds = array<i64: 6, 32>}, {transform_indices = @transform_3, window_bounds = array<i64: 1, 1, 32>}, {transform_indices = @transform_4, window_bounds = array<i64: 1, 1, 32>}, {transform_indices = @transform_5, window_bounds = array<i64: 1, 32, 96>}, {transform_indices = @transform_6, window_bounds = array<i64: 1, 1, 96>}, {transform_indices = @transform_7, window_bounds = array<i64: 1, 32, 32>}, {transform_indices = @transform_8, window_bounds = array<i64: 1, 1, 32>}, {transform_indices = @transform_9, window_bounds = array<i64: 1, 1, 32>}, {transform_indices = @transform_10, window_bounds = array<i64: 1, 1, 32>}, {transform_indices = @transform_11, window_bounds = array<i64: 1, 32, 64>}, {transform_indices = @transform_12, window_bounds = array<i64: 1, 1, 64>}, {transform_indices = @transform_13, window_bounds = array<i64: 1, 64, 32>}, {transform_indices = @transform_14, window_bounds = array<i64: 1, 1, 32>}, {pipeline_mode = #tpu.pipeline_mode<synchronous>, transform_indices = @transform_15, window_bounds = array<i64: 1, 32>}, {pipeline_mode = #tpu.pipeline_mode<synchronous>, transform_indices = @transform_16, window_bounds = array<i64: 1, 32>}, {pipeline_mode = #tpu.pipeline_mode<synchronous>, transform_indices = @transform_17, window_bounds = array<i64: 32, 512>}, {pipeline_mode = #tpu.pipeline_mode<synchronous>, transform_indices = @transform_18, window_bounds = array<i64: 1, 512>}, {transform_indices = @transform_19, window_bounds = array<i64: 1, 1, 512>}]} {
    %c0_i32 = arith.constant 0 : i32
    %0 = arith.cmpi eq, %arg1, %c0_i32 : i32
    %1 = arith.extui %0 : i1 to i32
    %c0_i32_0 = arith.constant 0 : i32
    %2 = arith.cmpi ne, %1, %c0_i32_0 : i32
    scf.if %2 {
      %c0_68 = arith.constant 0 : index
      %c0_69 = arith.constant 0 : index
      %c0_70 = arith.constant 0 : index
      %148 = vector.load %arg2[%c0_68, %c0_69, %c0_70] : memref<1x6x768xbf16, #tpu.memory_space<vmem>>, vector<1x6x768xbf16>
      %149 = vector.shape_cast %148 : vector<1x6x768xbf16> to vector<6x768xbf16>
      %c0_71 = arith.constant 0 : index
      %c0_72 = arith.constant 0 : index
      %150 = vector.load %arg3[%c0_71, %c0_72] : memref<768x32xbf16, #tpu.memory_space<vmem>>, vector<768x32xbf16>
      %cst_73 = arith.constant dense<0.000000e+00> : vector<6x32xf32>
      %151 = tpu.matmul %149, %150, %cst_73 {dimension_numbers = #tpu.dot_dimension_numbers<[1], [0], [0], [1], [0, 0, 1, 1], [], []>} : vector<6x768xbf16>, vector<768x32xbf16>, vector<6x32xf32> -> vector<6x32xf32>
      %c0_74 = arith.constant 0 : index
      %c0_75 = arith.constant 0 : index
      %152 = vector.load %arg4[%c0_74, %c0_75] : memref<6x32xf32, #tpu.memory_space<vmem>>, vector<6x32xf32>
      %153 = arith.addf %151, %152 : vector<6x32xf32>
      %c0_76 = arith.constant 0 : index
      %c0_77 = arith.constant 0 : index
      %154 = vector.load %arg22[%c0_76, %c0_77] : memref<6x32xf32, #tpu.memory_space<vmem>>, vector<6x32xf32>
      tpu.vector_store %arg22[%c0_76, %c0_77], %153 {strides = array<i32>} : memref<6x32xf32, #tpu.memory_space<vmem>>, vector<6x32xf32>,
    } else {
    }
    %c0 = arith.constant 0 : index
    %c0_1 = arith.constant 0 : index
    %3 = vector.load %arg22[%c0, %c0_1] : memref<6x32xf32, #tpu.memory_space<vmem>>, vector<6x32xf32>
    %c0_2 = arith.constant 0 : index
    %c0_3 = arith.constant 0 : index
    %c0_4 = arith.constant 0 : index
    %4 = vector.load %arg5[%c0_2, %c0_3, %c0_4] : memref<1x1x32xf32, #tpu.memory_space<vmem>>, vector<1x1x32xf32>
    %5 = vector.shape_cast %4 : vector<1x1x32xf32> to vector<1x32xf32>
    %c0_5 = arith.constant 0 : index
    %c0_6 = arith.constant 0 : index
    %c0_7 = arith.constant 0 : index
    %6 = vector.load %arg6[%c0_5, %c0_6, %c0_7] : memref<1x1x32xf32, #tpu.memory_space<vmem>>, vector<1x1x32xf32>
    %7 = vector.shape_cast %6 : vector<1x1x32xf32> to vector<1x32xf32>
    %cst = arith.constant dense<0.000000e+00> : vector<6xf32>
    %8 = vector.multi_reduction <add>, %3, %cst [1] : vector<6x32xf32> to vector<6xf32>
    %9 = vector.shape_cast %8 : vector<6xf32> to vector<6x1xf32>
    %cst_8 = arith.constant 3.200000e+01 : f32
    %10 = vector.broadcast %cst_8 : f32 to vector<6x1xf32>
    %11 = arith.divf %9, %10 : vector<6x1xf32>
    %12 = vector.broadcast %11 : vector<6x1xf32> to vector<6x32xf32>
    %13 = arith.subf %3, %12 : vector<6x32xf32>
    %14 = arith.mulf %13, %13 : vector<6x32xf32>
    %cst_9 = arith.constant dense<0.000000e+00> : vector<6xf32>
    %15 = vector.multi_reduction <add>, %14, %cst_9 [1] : vector<6x32xf32> to vector<6xf32>
    %16 = vector.shape_cast %15 : vector<6xf32> to vector<6x1xf32>
    %cst_10 = arith.constant 3.200000e+01 : f32
    %17 = vector.broadcast %cst_10 : f32 to vector<6x1xf32>
    %18 = arith.divf %16, %17 : vector<6x1xf32>
    %19 = vector.broadcast %11 : vector<6x1xf32> to vector<6x32xf32>
    %20 = arith.subf %3, %19 : vector<6x32xf32>
    %cst_11 = arith.constant 9.99999996E-13 : f32
    %21 = vector.broadcast %cst_11 : f32 to vector<6x1xf32>
    %22 = arith.addf %18, %21 : vector<6x1xf32>
    %23 = math.rsqrt %22 : vector<6x1xf32>
    %24 = vector.broadcast %23 : vector<6x1xf32> to vector<6x32xf32>
    %25 = arith.mulf %20, %24 : vector<6x32xf32>
    %26 = vector.broadcast %5 : vector<1x32xf32> to vector<6x32xf32>
    %27 = arith.mulf %25, %26 : vector<6x32xf32>
    %28 = vector.broadcast %7 : vector<1x32xf32> to vector<6x32xf32>
    %29 = arith.addf %27, %28 : vector<6x32xf32>
    %30 = arith.truncf %29 : vector<6x32xf32> to vector<6x32xbf16>
    %c0_12 = arith.constant 0 : index
    %c0_13 = arith.constant 0 : index
    %c0_14 = arith.constant 0 : index
    %31 = vector.load %arg7[%c0_12, %c0_13, %c0_14] : memref<1x32x96xbf16, #tpu.memory_space<vmem>>, vector<1x32x96xbf16>
    %32 = vector.shape_cast %31 : vector<1x32x96xbf16> to vector<32x96xbf16>
    %cst_15 = arith.constant dense<0.000000e+00> : vector<6x96xf32>
    %33 = tpu.matmul %30, %32, %cst_15 {dimension_numbers = #tpu.dot_dimension_numbers<[1], [0], [0], [1], [0, 0, 1, 1], [], []>} : vector<6x32xbf16>, vector<32x96xbf16>, vector<6x96xf32> -> vector<6x96xf32>
    %c0_16 = arith.constant 0 : index
    %c0_17 = arith.constant 0 : index
    %c0_18 = arith.constant 0 : index
    %34 = vector.load %arg8[%c0_16, %c0_17, %c0_18] : memref<1x1x96xf32, #tpu.memory_space<vmem>>, vector<1x1x96xf32>
    %35 = vector.shape_cast %34 : vector<1x1x96xf32> to vector<1x96xf32>
    %36 = vector.broadcast %35 : vector<1x96xf32> to vector<6x96xf32>
    %37 = arith.addf %33, %36 : vector<6x96xf32>
    %38 = vector.extract_strided_slice %37 {offsets = [0, 0], sizes = [6, 16], strides = [1, 1]} : vector<6x96xf32> to vector<6x16xf32>
    %39 = arith.truncf %38 : vector<6x16xf32> to vector<6x16xbf16>
    %40 = vector.extract_strided_slice %37 {offsets = [0, 32], sizes = [6, 16], strides = [1, 1]} : vector<6x96xf32> to vector<6x16xf32>
    %41 = arith.truncf %40 : vector<6x16xf32> to vector<6x16xbf16>
    %42 = vector.extract_strided_slice %37 {offsets = [0, 64], sizes = [6, 16], strides = [1, 1]} : vector<6x96xf32> to vector<6x16xf32>
    %43 = arith.truncf %42 : vector<6x16xf32> to vector<6x16xbf16>
    %cst_19 = arith.constant dense<0.000000e+00> : vector<6x6xf32>
    %44 = tpu.matmul %39, %41, %cst_19 {dimension_numbers = #tpu.dot_dimension_numbers<[1], [1], [0], [0], [0, 0, 1, 0], [], []>} : vector<6x16xbf16>, vector<6x16xbf16>, vector<6x6xf32> -> vector<6x6xf32>
    %cst_20 = arith.constant 2.500000e-01 : f32
    %45 = vector.broadcast %cst_20 : f32 to vector<6x6xf32>
    %46 = arith.mulf %44, %45 : vector<6x6xf32>
    %cst_21 = arith.constant dense<0xFF800000> : vector<6xf32>
    %47 = vector.multi_reduction <maximumf>, %46, %cst_21 [1] : vector<6x6xf32> to vector<6xf32>
    %48 = vector.shape_cast %47 : vector<6xf32> to vector<6x1xf32>
    %49 = vector.broadcast %48 : vector<6x1xf32> to vector<6x6xf32>
    %50 = arith.subf %46, %49 : vector<6x6xf32>
    %51 = math.exp %50 : vector<6x6xf32>
    %cst_22 = arith.constant dense<0.000000e+00> : vector<6xf32>
    %52 = vector.multi_reduction <add>, %51, %cst_22 [1] : vector<6x6xf32> to vector<6xf32>
    %53 = vector.shape_cast %52 : vector<6xf32> to vector<6x1xf32>
    %54 = vector.broadcast %53 : vector<6x1xf32> to vector<6x6xf32>
    %55 = arith.divf %51, %54 : vector<6x6xf32>
    %56 = arith.truncf %55 : vector<6x6xf32> to vector<6x6xbf16>
    %cst_23 = arith.constant dense<0.000000e+00> : vector<6x16xf32>
    %57 = tpu.matmul %56, %43, %cst_23 {dimension_numbers = #tpu.dot_dimension_numbers<[1], [0], [0], [1], [0, 0, 1, 1], [], []>} : vector<6x6xbf16>, vector<6x16xbf16>, vector<6x16xf32> -> vector<6x16xf32>
    %58 = vector.extract_strided_slice %37 {offsets = [0, 16], sizes = [6, 16], strides = [1, 1]} : vector<6x96xf32> to vector<6x16xf32>
    %59 = arith.truncf %58 : vector<6x16xf32> to vector<6x16xbf16>
    %60 = vector.extract_strided_slice %37 {offsets = [0, 48], sizes = [6, 16], strides = [1, 1]} : vector<6x96xf32> to vector<6x16xf32>
    %61 = arith.truncf %60 : vector<6x16xf32> to vector<6x16xbf16>
    %62 = vector.extract_strided_slice %37 {offsets = [0, 80], sizes = [6, 16], strides = [1, 1]} : vector<6x96xf32> to vector<6x16xf32>
    %63 = arith.truncf %62 : vector<6x16xf32> to vector<6x16xbf16>
    %cst_24 = arith.constant dense<0.000000e+00> : vector<6x6xf32>
    %64 = tpu.matmul %59, %61, %cst_24 {dimension_numbers = #tpu.dot_dimension_numbers<[1], [1], [0], [0], [0, 0, 1, 0], [], []>} : vector<6x16xbf16>, vector<6x16xbf16>, vector<6x6xf32> -> vector<6x6xf32>
    %cst_25 = arith.constant 2.500000e-01 : f32
    %65 = vector.broadcast %cst_25 : f32 to vector<6x6xf32>
    %66 = arith.mulf %64, %65 : vector<6x6xf32>
    %cst_26 = arith.constant dense<0xFF800000> : vector<6xf32>
    %67 = vector.multi_reduction <maximumf>, %66, %cst_26 [1] : vector<6x6xf32> to vector<6xf32>
    %68 = vector.shape_cast %67 : vector<6xf32> to vector<6x1xf32>
    %69 = vector.broadcast %68 : vector<6x1xf32> to vector<6x6xf32>
    %70 = arith.subf %66, %69 : vector<6x6xf32>
    %71 = math.exp %70 : vector<6x6xf32>
    %cst_27 = arith.constant dense<0.000000e+00> : vector<6xf32>
    %72 = vector.multi_reduction <add>, %71, %cst_27 [1] : vector<6x6xf32> to vector<6xf32>
    %73 = vector.shape_cast %72 : vector<6xf32> to vector<6x1xf32>
    %74 = vector.broadcast %73 : vector<6x1xf32> to vector<6x6xf32>
    %75 = arith.divf %71, %74 : vector<6x6xf32>
    %76 = arith.truncf %75 : vector<6x6xf32> to vector<6x6xbf16>
    %cst_28 = arith.constant dense<0.000000e+00> : vector<6x16xf32>
    %77 = tpu.matmul %76, %63, %cst_28 {dimension_numbers = #tpu.dot_dimension_numbers<[1], [0], [0], [1], [0, 0, 1, 1], [], []>} : vector<6x6xbf16>, vector<6x16xbf16>, vector<6x16xf32> -> vector<6x16xf32>
    %78 = tpu.concatenate %57, %77 in 1 : vector<6x16xf32>, vector<6x16xf32> -> vector<6x32xf32>
    %79 = arith.truncf %78 : vector<6x32xf32> to vector<6x32xbf16>
    %c0_29 = arith.constant 0 : index
    %c0_30 = arith.constant 0 : index
    %c0_31 = arith.constant 0 : index
    %80 = vector.load %arg9[%c0_29, %c0_30, %c0_31] : memref<1x32x32xbf16, #tpu.memory_space<vmem>>, vector<1x32x32xbf16>
    %81 = vector.shape_cast %80 : vector<1x32x32xbf16> to vector<32x32xbf16>
    %cst_32 = arith.constant dense<0.000000e+00> : vector<6x32xf32>
    %82 = tpu.matmul %79, %81, %cst_32 {dimension_numbers = #tpu.dot_dimension_numbers<[1], [0], [0], [1], [0, 0, 1, 1], [], []>} : vector<6x32xbf16>, vector<32x32xbf16>, vector<6x32xf32> -> vector<6x32xf32>
    %c0_33 = arith.constant 0 : index
    %c0_34 = arith.constant 0 : index
    %c0_35 = arith.constant 0 : index
    %83 = vector.load %arg10[%c0_33, %c0_34, %c0_35] : memref<1x1x32xf32, #tpu.memory_space<vmem>>, vector<1x1x32xf32>
    %84 = vector.shape_cast %83 : vector<1x1x32xf32> to vector<1x32xf32>
    %85 = vector.broadcast %84 : vector<1x32xf32> to vector<6x32xf32>
    %86 = arith.addf %82, %85 : vector<6x32xf32>
    %87 = arith.addf %3, %86 : vector<6x32xf32>
    %c0_36 = arith.constant 0 : index
    %c0_37 = arith.constant 0 : index
    %c0_38 = arith.constant 0 : index
    %88 = vector.load %arg11[%c0_36, %c0_37, %c0_38] : memref<1x1x32xf32, #tpu.memory_space<vmem>>, vector<1x1x32xf32>
    %89 = vector.shape_cast %88 : vector<1x1x32xf32> to vector<1x32xf32>
    %c0_39 = arith.constant 0 : index
    %c0_40 = arith.constant 0 : index
    %c0_41 = arith.constant 0 : index
    %90 = vector.load %arg12[%c0_39, %c0_40, %c0_41] : memref<1x1x32xf32, #tpu.memory_space<vmem>>, vector<1x1x32xf32>
    %91 = vector.shape_cast %90 : vector<1x1x32xf32> to vector<1x32xf32>
    %cst_42 = arith.constant dense<0.000000e+00> : vector<6xf32>
    %92 = vector.multi_reduction <add>, %87, %cst_42 [1] : vector<6x32xf32> to vector<6xf32>
    %93 = vector.shape_cast %92 : vector<6xf32> to vector<6x1xf32>
    %cst_43 = arith.constant 3.200000e+01 : f32
    %94 = vector.broadcast %cst_43 : f32 to vector<6x1xf32>
    %95 = arith.divf %93, %94 : vector<6x1xf32>
    %96 = vector.broadcast %95 : vector<6x1xf32> to vector<6x32xf32>
    %97 = arith.subf %87, %96 : vector<6x32xf32>
    %98 = arith.mulf %97, %97 : vector<6x32xf32>
    %cst_44 = arith.constant dense<0.000000e+00> : vector<6xf32>
    %99 = vector.multi_reduction <add>, %98, %cst_44 [1] : vector<6x32xf32> to vector<6xf32>
    %100 = vector.shape_cast %99 : vector<6xf32> to vector<6x1xf32>
    %cst_45 = arith.constant 3.200000e+01 : f32
    %101 = vector.broadcast %cst_45 : f32 to vector<6x1xf32>
    %102 = arith.divf %100, %101 : vector<6x1xf32>
    %103 = vector.broadcast %95 : vector<6x1xf32> to vector<6x32xf32>
    %104 = arith.subf %87, %103 : vector<6x32xf32>
    %cst_46 = arith.constant 9.99999996E-13 : f32
    %105 = vector.broadcast %cst_46 : f32 to vector<6x1xf32>
    %106 = arith.addf %102, %105 : vector<6x1xf32>
    %107 = math.rsqrt %106 : vector<6x1xf32>
    %108 = vector.broadcast %107 : vector<6x1xf32> to vector<6x32xf32>
    %109 = arith.mulf %104, %108 : vector<6x32xf32>
    %110 = vector.broadcast %89 : vector<1x32xf32> to vector<6x32xf32>
    %111 = arith.mulf %109, %110 : vector<6x32xf32>
    %112 = vector.broadcast %91 : vector<1x32xf32> to vector<6x32xf32>
    %113 = arith.addf %111, %112 : vector<6x32xf32>
    %114 = arith.truncf %113 : vector<6x32xf32> to vector<6x32xbf16>
    %c0_47 = arith.constant 0 : index
    %c0_48 = arith.constant 0 : index
    %c0_49 = arith.constant 0 : index
    %115 = vector.load %arg13[%c0_47, %c0_48, %c0_49] : memref<1x32x64xbf16, #tpu.memory_space<vmem>>, vector<1x32x64xbf16>
    %116 = vector.shape_cast %115 : vector<1x32x64xbf16> to vector<32x64xbf16>
    %cst_50 = arith.constant dense<0.000000e+00> : vector<6x64xf32>
    %117 = tpu.matmul %114, %116, %cst_50 {dimension_numbers = #tpu.dot_dimension_numbers<[1], [0], [0], [1], [0, 0, 1, 1], [], []>} : vector<6x32xbf16>, vector<32x64xbf16>, vector<6x64xf32> -> vector<6x64xf32>
    %c0_51 = arith.constant 0 : index
    %c0_52 = arith.constant 0 : index
    %c0_53 = arith.constant 0 : index
    %118 = vector.load %arg14[%c0_51, %c0_52, %c0_53] : memref<1x1x64xf32, #tpu.memory_space<vmem>>, vector<1x1x64xf32>
    %119 = vector.shape_cast %118 : vector<1x1x64xf32> to vector<1x64xf32>
    %120 = vector.broadcast %119 : vector<1x64xf32> to vector<6x64xf32>
    %121 = arith.addf %117, %120 : vector<6x64xf32>
    %cst_54 = arith.constant 5.000000e-01 : f32
    %122 = vector.broadcast %cst_54 : f32 to vector<6x64xf32>
    %123 = arith.mulf %122, %121 : vector<6x64xf32>
    %cst_55 = arith.constant 4.471500e-02 : f32
    %124 = vector.broadcast %cst_55 : f32 to vector<6x64xf32>
    %125 = arith.mulf %124, %121 : vector<6x64xf32>
    %126 = arith.mulf %125, %121 : vector<6x64xf32>
    %127 = arith.mulf %126, %121 : vector<6x64xf32>
    %128 = arith.addf %121, %127 : vector<6x64xf32>
    %cst_56 = arith.constant 0.797884583 : f32
    %129 = vector.broadcast %cst_56 : f32 to vector<6x64xf32>
    %130 = arith.mulf %129, %128 : vector<6x64xf32>
    %131 = math.tanh %130 : vector<6x64xf32>
    %cst_57 = arith.constant 1.000000e+00 : f32
    %132 = vector.broadcast %cst_57 : f32 to vector<6x64xf32>
    %133 = arith.addf %132, %131 : vector<6x64xf32>
    %134 = arith.mulf %123, %133 : vector<6x64xf32>
    %135 = arith.truncf %134 : vector<6x64xf32> to vector<6x64xbf16>
    %c0_58 = arith.constant 0 : index
    %c0_59 = arith.constant 0 : index
    %c0_60 = arith.constant 0 : index
    %136 = vector.load %arg15[%c0_58, %c0_59, %c0_60] : memref<1x64x32xbf16, #tpu.memory_space<vmem>>, vector<1x64x32xbf16>
    %137 = vector.shape_cast %136 : vector<1x64x32xbf16> to vector<64x32xbf16>
    %cst_61 = arith.constant dense<0.000000e+00> : vector<6x32xf32>
    %138 = tpu.matmul %135, %137, %cst_61 {dimension_numbers = #tpu.dot_dimension_numbers<[1], [0], [0], [1], [0, 0, 1, 1], [], []>} : vector<6x64xbf16>, vector<64x32xbf16>, vector<6x32xf32> -> vector<6x32xf32>
    %139 = arith.addf %87, %138 : vector<6x32xf32>
    %c0_62 = arith.constant 0 : index
    %c0_63 = arith.constant 0 : index
    %c0_64 = arith.constant 0 : index
    %140 = vector.load %arg16[%c0_62, %c0_63, %c0_64] : memref<1x1x32xf32, #tpu.memory_space<vmem>>, vector<1x1x32xf32>
    %141 = vector.shape_cast %140 : vector<1x1x32xf32> to vector<1x32xf32>
    %142 = vector.broadcast %141 : vector<1x32xf32> to vector<6x32xf32>
    %143 = arith.addf %139, %142 : vector<6x32xf32>
    %c0_65 = arith.constant 0 : index
    %c0_66 = arith.constant 0 : index
    %144 = vector.load %arg22[%c0_65, %c0_66] : memref<6x32xf32, #tpu.memory_space<vmem>>, vector<6x32xf32>
    tpu.vector_store %arg22[%c0_65, %c0_66], %143 {strides = array<i32>} : memref<6x32xf32, #tpu.memory_space<vmem>>, vector<6x32xf32>,
    %c1_i32 = arith.constant 1 : i32
    %145 = arith.cmpi eq, %arg1, %c1_i32 : i32
    %146 = arith.extui %145 : i1 to i32
    %c0_i32_67 = arith.constant 0 : i32
    %147 = arith.cmpi ne, %146, %c0_i32_67 : i32
    scf.if %147 {
      %148 = vector.extract_strided_slice %143 {offsets = [0, 0], sizes = [1, 32], strides = [1, 1]} : vector<6x32xf32> to vector<1x32xf32>
      %c0_68 = arith.constant 0 : index
      %c0_69 = arith.constant 0 : index
      %149 = vector.load %arg17[%c0_68, %c0_69] : memref<1x32xf32, #tpu.memory_space<vmem>>, vector<1x32xf32>
      %c0_70 = arith.constant 0 : index
      %c0_71 = arith.constant 0 : index
      %150 = vector.load %arg18[%c0_70, %c0_71] : memref<1x32xf32, #tpu.memory_space<vmem>>, vector<1x32xf32>
      %cst_72 = arith.constant dense<0.000000e+00> : vector<1xf32>
      %151 = vector.multi_reduction <add>, %148, %cst_72 [1] : vector<1x32xf32> to vector<1xf32>
      %152 = vector.shape_cast %151 : vector<1xf32> to vector<1x1xf32>
      %cst_73 = arith.constant 3.200000e+01 : f32
      %153 = vector.broadcast %cst_73 : f32 to vector<1x1xf32>
      %154 = arith.divf %152, %153 : vector<1x1xf32>
      %155 = vector.broadcast %154 : vector<1x1xf32> to vector<1x32xf32>
      %156 = arith.subf %148, %155 : vector<1x32xf32>
      %157 = arith.mulf %156, %156 : vector<1x32xf32>
      %cst_74 = arith.constant dense<0.000000e+00> : vector<1xf32>
      %158 = vector.multi_reduction <add>, %157, %cst_74 [1] : vector<1x32xf32> to vector<1xf32>
      %159 = vector.shape_cast %158 : vector<1xf32> to vector<1x1xf32>
      %cst_75 = arith.constant 3.200000e+01 : f32
      %160 = vector.broadcast %cst_75 : f32 to vector<1x1xf32>
      %161 = arith.divf %159, %160 : vector<1x1xf32>
      %162 = vector.broadcast %154 : vector<1x1xf32> to vector<1x32xf32>
      %163 = arith.subf %148, %162 : vector<1x32xf32>
      %cst_76 = arith.constant 9.99999996E-13 : f32
      %164 = vector.broadcast %cst_76 : f32 to vector<1x1xf32>
      %165 = arith.addf %161, %164 : vector<1x1xf32>
      %166 = math.rsqrt %165 : vector<1x1xf32>
      %167 = vector.broadcast %166 : vector<1x1xf32> to vector<1x32xf32>
      %168 = arith.mulf %163, %167 : vector<1x32xf32>
      %169 = arith.mulf %168, %149 : vector<1x32xf32>
      %170 = arith.addf %169, %150 : vector<1x32xf32>
      %171 = arith.truncf %170 : vector<1x32xf32> to vector<1x32xbf16>
      %c0_77 = arith.constant 0 : index
      %c0_78 = arith.constant 0 : index
      %172 = vector.load %arg19[%c0_77, %c0_78] : memref<32x512xbf16, #tpu.memory_space<vmem>>, vector<32x512xbf16>
      %cst_79 = arith.constant dense<0.000000e+00> : vector<1x512xf32>
      %173 = tpu.matmul %171, %172, %cst_79 {dimension_numbers = #tpu.dot_dimension_numbers<[1], [0], [0], [1], [0, 0, 1, 1], [], []>} : vector<1x32xbf16>, vector<32x512xbf16>, vector<1x512xf32> -> vector<1x512xf32>
      %c0_80 = arith.constant 0 : index
      %c0_81 = arith.constant 0 : index
      %174 = vector.load %arg20[%c0_80, %c0_81] : memref<1x512xf32, #tpu.memory_space<vmem>>, vector<1x512xf32>
      %175 = arith.addf %173, %174 : vector<1x512xf32>
      %c0_82 = arith.constant 0 : index
      %c0_83 = arith.constant 0 : index
      %c0_84 = arith.constant 0 : index
      %176 = vector.load %arg21[%c0_82, %c0_83, %c0_84] : memref<1x1x512xf32, #tpu.memory_space<vmem>>, vector<1x1x512xf32>
      %177 = vector.shape_cast %176 : vector<1x1x512xf32> to vector<1x512xf32>
      %178 = vector.shape_cast %175 : vector<1x512xf32> to vector<1x1x512xf32>
      tpu.vector_store %arg21[%c0_82, %c0_83, %c0_84], %178 {strides = array<i32>} : memref<1x1x512xf32, #tpu.memory_space<vmem>>, vector<1x1x512xf32>,
    } else {
    }
    return
  }
  func.func @transform_0(%arg0: i32, %arg1: i32) -> (i32, i32, i32) {
    %c0_i32 = arith.constant 0 : i32
    %c0_i32_0 = arith.constant 0 : i32
    %c0_i32_1 = arith.constant 0 : i32
    return %arg0, %c0_i32, %c0_i32_0 : i32, i32, i32
  }
  func.func @transform_1(%arg0: i32, %arg1: i32) -> (i32, i32) {
    %c0_i32 = arith.constant 0 : i32
    %c0_i32_0 = arith.constant 0 : i32
    %c0_i32_1 = arith.constant 0 : i32
    return %c0_i32, %c0_i32_0 : i32, i32
  }
  func.func @transform_2(%arg0: i32, %arg1: i32) -> (i32, i32) {
    %c0_i32 = arith.constant 0 : i32
    %c0_i32_0 = arith.constant 0 : i32
    %c0_i32_1 = arith.constant 0 : i32
    return %c0_i32, %c0_i32_0 : i32, i32
  }
  func.func @transform_3(%arg0: i32, %arg1: i32) -> (i32, i32, i32) {
    %c0_i32 = arith.constant 0 : i32
    %c0_i32_0 = arith.constant 0 : i32
    %c0_i32_1 = arith.constant 0 : i32
    return %arg1, %c0_i32, %c0_i32_0 : i32, i32, i32
  }
  func.func @transform_4(%arg0: i32, %arg1: i32) -> (i32, i32, i32) {
    %c0_i32 = arith.constant 0 : i32
    %c0_i32_0 = arith.constant 0 : i32
    %c0_i32_1 = arith.constant 0 : i32
    return %arg1, %c0_i32, %c0_i32_0 : i32, i32, i32
  }
  func.func @transform_5(%arg0: i32, %arg1: i32) -> (i32, i32, i32) {
    %c0_i32 = arith.constant 0 : i32
    %c0_i32_0 = arith.constant 0 : i32
    %c0_i32_1 = arith.constant 0 : i32
    return %arg1, %c0_i32, %c0_i32_0 : i32, i32, i32
  }
  func.func @transform_6(%arg0: i32, %arg1: i32) -> (i32, i32, i32) {
    %c0_i32 = arith.constant 0 : i32
    %c0_i32_0 = arith.constant 0 : i32
    %c0_i32_1 = arith.constant 0 : i32
    return %arg1, %c0_i32, %c0_i32_0 : i32, i32, i32
  }
  func.func @transform_7(%arg0: i32, %arg1: i32) -> (i32, i32, i32) {
    %c0_i32 = arith.constant 0 : i32
    %c0_i32_0 = arith.constant 0 : i32
    %c0_i32_1 = arith.constant 0 : i32
    return %arg1, %c0_i32, %c0_i32_0 : i32, i32, i32
  }
  func.func @transform_8(%arg0: i32, %arg1: i32) -> (i32, i32, i32) {
    %c0_i32 = arith.constant 0 : i32
    %c0_i32_0 = arith.constant 0 : i32
    %c0_i32_1 = arith.constant 0 : i32
    return %arg1, %c0_i32, %c0_i32_0 : i32, i32, i32
  }
  func.func @transform_9(%arg0: i32, %arg1: i32) -> (i32, i32, i32) {
    %c0_i32 = arith.constant 0 : i32
    %c0_i32_0 = arith.constant 0 : i32
    %c0_i32_1 = arith.constant 0 : i32
    return %arg1, %c0_i32, %c0_i32_0 : i32, i32, i32
  }
  func.func @transform_10(%arg0: i32, %arg1: i32) -> (i32, i32, i32) {
    %c0_i32 = arith.constant 0 : i32
    %c0_i32_0 = arith.constant 0 : i32
    %c0_i32_1 = arith.constant 0 : i32
    return %arg1, %c0_i32, %c0_i32_0 : i32, i32, i32
  }
  func.func @transform_11(%arg0: i32, %arg1: i32) -> (i32, i32, i32) {
    %c0_i32 = arith.constant 0 : i32
    %c0_i32_0 = arith.constant 0 : i32
    %c0_i32_1 = arith.constant 0 : i32
    return %arg1, %c0_i32, %c0_i32_0 : i32, i32, i32
  }
  func.func @transform_12(%arg0: i32, %arg1: i32) -> (i32, i32, i32) {
    %c0_i32 = arith.constant 0 : i32
    %c0_i32_0 = arith.constant 0 : i32
    %c0_i32_1 = arith.constant 0 : i32
    return %arg1, %c0_i32, %c0_i32_0 : i32, i32, i32
  }
  func.func @transform_13(%arg0: i32, %arg1: i32) -> (i32, i32, i32) {
    %c0_i32 = arith.constant 0 : i32
    %c0_i32_0 = arith.constant 0 : i32
    %c0_i32_1 = arith.constant 0 : i32
    return %arg1, %c0_i32, %c0_i32_0 : i32, i32, i32
  }
  func.func @transform_14(%arg0: i32, %arg1: i32) -> (i32, i32, i32) {
    %c0_i32 = arith.constant 0 : i32
    %c0_i32_0 = arith.constant 0 : i32
    %c0_i32_1 = arith.constant 0 : i32
    return %arg1, %c0_i32, %c0_i32_0 : i32, i32, i32
  }
  func.func @transform_15(%arg0: i32, %arg1: i32) -> (i32, i32) {
    %c0_i32 = arith.constant 0 : i32
    %c0_i32_0 = arith.constant 0 : i32
    %c0_i32_1 = arith.constant 0 : i32
    return %c0_i32, %c0_i32_0 : i32, i32
  }
  func.func @transform_16(%arg0: i32, %arg1: i32) -> (i32, i32) {
    %c0_i32 = arith.constant 0 : i32
    %c0_i32_0 = arith.constant 0 : i32
    %c0_i32_1 = arith.constant 0 : i32
    return %c0_i32, %c0_i32_0 : i32, i32
  }
  func.func @transform_17(%arg0: i32, %arg1: i32) -> (i32, i32) {
    %c0_i32 = arith.constant 0 : i32
    %c0_i32_0 = arith.constant 0 : i32
    %c0_i32_1 = arith.constant 0 : i32
    return %c0_i32, %c0_i32_0 : i32, i32
  }
  func.func @transform_18(%arg0: i32, %arg1: i32) -> (i32, i32) {
    %c0_i32 = arith.constant 0 : i32
    %c0_i32_0 = arith.constant 0 : i32
    %c0_i32_1 = arith.constant 0 : i32
    return %c0_i32, %c0_i32_0 : i32, i32
  }
  func.func @transform_19(%arg0: i32, %arg1: i32) -> (i32, i32, i32) {
    %c0_i32 = arith.constant 0 : i32
    %c0_i32_0 = arith.constant 0 : i32
    %c0_i32_1 = arith.constant 0 : i32
    return %arg0, %c0_i32, %c0_i32_0 : i32, i32, i32
  }
}

</mosaic_0001>

<llo_original>
// kernel: deit_forward.1
$region0: #{deit_forward.1}
  #allocation0 [shape = 'u32[]', space=smem, size = 0x4, offset = 0x4, fixed_abs, tag = 'smem constant byte address 0x4 - core index']
  #allocation1 [shape = 'u32[144,128]{1,0:T(1,128)}', space=vmem, size = 0x12000, scoped, tag = 'internal scratch']
  #allocation2 [shape = 'f32[6,32]{1,0:T(8,128)}', space=vmem, size = 0x1000, scoped, tag = 'scratch operand']
  %s0 = inlined_call_operand.vmem [shape: bf16[2,6,768], index: 0, kind: input, shape index: {}]
  %s1 = inlined_call_operand.vmem [shape: bf16[768,32], index: 1, kind: input, shape index: {}]
  %s2 = inlined_call_operand.vmem [shape: f32[6,32], index: 2, kind: input, shape index: {}]
  %s3 = inlined_call_operand.vmem [shape: f32[2,1,32], index: 3, kind: input, shape index: {}]
  %s4 = inlined_call_operand.vmem [shape: f32[2,1,32], index: 4, kind: input, shape index: {}]
  %s5 = inlined_call_operand.vmem [shape: bf16[2,32,96], index: 5, kind: input, shape index: {}]
  %s6 = inlined_call_operand.vmem [shape: f32[2,1,96], index: 6, kind: input, shape index: {}]
  %s7 = inlined_call_operand.vmem [shape: bf16[2,32,32], index: 7, kind: input, shape index: {}]
  %s8 = inlined_call_operand.vmem [shape: f32[2,1,32], index: 8, kind: input, shape index: {}]
  %s9 = inlined_call_operand.vmem [shape: f32[2,1,32], index: 9, kind: input, shape index: {}]
  %s10 = inlined_call_operand.vmem [shape: f32[2,1,32], index: 10, kind: input, shape index: {}]
  %s11 = inlined_call_operand.vmem [shape: bf16[2,32,64], index: 11, kind: input, shape index: {}]
  %s12 = inlined_call_operand.vmem [shape: f32[2,1,64], index: 12, kind: input, shape index: {}]
  %s13 = inlined_call_operand.vmem [shape: bf16[2,64,32], index: 13, kind: input, shape index: {}]
  %s14 = inlined_call_operand.vmem [shape: f32[2,1,32], index: 14, kind: input, shape index: {}]
  %s15 = inlined_call_operand.vmem [shape: f32[1,32], index: 15, kind: input, shape index: {}]
  %s16 = inlined_call_operand.vmem [shape: f32[1,32], index: 16, kind: input, shape index: {}]
  %s17 = inlined_call_operand.vmem [shape: bf16[32,512], index: 17, kind: input, shape index: {}]
  %s18 = inlined_call_operand.vmem [shape: f32[1,512], index: 18, kind: input, shape index: {}]
  %s19 = inlined_call_operand.vmem [shape: f32[2,1,512], index: 19, kind: output, shape index: {}]
  %s20 = sld [smem:[#allocation0]]
  $region117: #{deit_forward.1} parent=0
    _
  %s22 = ssub.s32 1, %s20
  %s23 = scalar_select 0, %s22, %s20
  loop: start=0, step=1, limit=6
  $region2: #{deit_forward.1} parent=0 // loop_pre_header
    _
  $region3: #{deit_forward.1} parent=0 // loop_header
    %s25 = sphi 0, %s29
    %p26 = scmp.ge.s32.totalorder %s25, 6
    %s32 = sphi 0, %s44
    %s33 = sphi 0, %s40
    %s34 = sphi 0, %s32
    %s35 = sphi 0, %s33
    %s36 = sphi 0, %s34
    %s37 = sphi 0, %s35
    %s47 = sphi 0, %s49
    %s50 = sphi 0, %s47
    %s51 = sphi 0, %s50
    %s67 = sphi 0, %s51
    %s71 = sphi 0, %s71
    %s73 = sphi 0, %s71
    %s74 = sphi 0, %s73
    %s88 = sphi 0, %s74
    %s92 = sphi 0, %s92
    %s94 = sphi 0, %s92
    %s95 = sphi 0, %s94
    %s109 = sphi 0, %s95
    %s115 = sphi 0, %s117
    %s118 = sphi 0, %s115
    %s119 = sphi 0, %s118
    %s135 = sphi 0, %s119
    %s141 = sphi 0, %s143
    %s144 = sphi 0, %s141
    %s145 = sphi 0, %s144
    %s161 = sphi 0, %s145
    %s167 = sphi 0, %s169
    %s170 = sphi 0, %s167
    %s171 = sphi 0, %s170
    %s187 = sphi 0, %s171
    %s193 = sphi 0, %s195
    %s196 = sphi 0, %s193
    %s197 = sphi 0, %s196
    %s213 = sphi 0, %s197
    %s219 = sphi 0, %s221
    %s222 = sphi 0, %s219
    %s223 = sphi 0, %s222
    %s239 = sphi 0, %s223
    %s245 = sphi 0, %s247
    %s248 = sphi 0, %s245
    %s249 = sphi 0, %s248
    %s265 = sphi 0, %s249
    %s271 = sphi 0, %s273
    %s274 = sphi 0, %s271
    %s275 = sphi 0, %s274
    %s291 = sphi 0, %s275
    %s297 = sphi 0, %s299
    %s300 = sphi 0, %s297
    %s301 = sphi 0, %s300
    %s317 = sphi 0, %s301
    %s323 = sphi 0, %s325
    %s326 = sphi 0, %s323
    %s327 = sphi 0, %s326
    %s343 = sphi 0, %s327
    %s349 = sphi 0, %s351
    %s352 = sphi 0, %s349
    %s353 = sphi 0, %s352
    %s369 = sphi 0, %s353
    %s375 = sphi 0, %s377
    %s378 = sphi 0, %s375
    %s379 = sphi 0, %s378
    %s395 = sphi 0, %s379
    %s401 = sphi 0, %s403
    %s404 = sphi 0, %s401
    %s405 = sphi 0, %s404
    %s421 = sphi 0, %s405
    %s425 = sphi 0, %s425
    %s427 = sphi 0, %s425
    %s428 = sphi 0, %s427
    %s442 = sphi 0, %s428
    %s446 = sphi 0, %s446
    %s448 = sphi 0, %s446
    %s449 = sphi 0, %s448
    %s463 = sphi 0, %s449
    %s467 = sphi 0, %s467
    %s469 = sphi 0, %s467
    %s470 = sphi 0, %s469
    %s484 = sphi 0, %s470
    %s488 = sphi 0, %s488
    %s490 = sphi 0, %s488
    %s491 = sphi 0, %s490
    %s505 = sphi 0, %s491
    %s511 = sphi 0, %s513
    %s514 = sphi 0, %s511
    %s515 = sphi 0, %s514
    %s531 = sphi 0, %s515
  $region4: #{deit_forward.1} parent=0 // loop_header_branch
    %28 = sbr.rel (%p26) target = $region8
  $region5: #{deit_forward.1} parent=0 // loop_body
    %s30 = ssub.s32 %s25, 1
    %s31 = ssub.s32 %s25, 2
    %s38 = sadd.s32 1, %s33
    %p39 = scmp.ge.s32.totalorder %s38, 2
    %s40 = scalar_select %p39, 0, %s38
    %s41 = sadd.s32 1, %s32
    %s42 = scalar_select %p39, %s41, %s32
    %p43 = scmp.ge.s32.totalorder %s42, 2
    %s44 = scalar_select %p43, 0, %s42
    %s45 = ssub.s32 %s32, %s44
    %p46 = scmp.eq.s32.totalorder %s45, 0
    %s48 = sadd.s32 %s47, 1
    %s49 = scalar_select %p46, %s47, %s48
    %p52 = pneg %p46
    %p53 = scmp.eq.s32.totalorder %s25, 3
    %p54 = por %p52, %p53
    %p55 = scmp.ne.s32.totalorder %s47, %s50
    %p56 = scmp.eq.s32.totalorder %s25, 0
    %p57 = por %p55, %p56
    %p58 = scmp.ne.s32.totalorder %s47, %s50
    %p59 = scmp.eq.s32.totalorder %s30, 3
    %p60 = por %p58, %p59
    %p61 = scmp.ne.s32.totalorder %s50, %s51
    %p62 = scmp.eq.s32.totalorder %s30, 0
    %p63 = por %p61, %p62
    %p64 = scmp.ne.s32.totalorder %s50, %s51
    %p65 = scmp.eq.s32.totalorder %s31, 3
    %p66 = por %p64, %p65
    %p68 = scmp.ne.s32.totalorder %s51, %s67
    %p69 = scmp.eq.s32.totalorder %s31, 0
    %p70 = por %p68, %p69
    %s72 = sadd.s32 %s71, 1
    %p75 = scmp.eq.s32.totalorder %s25, 3
    %p76 = scmp.ne.s32.totalorder %s71, %s73
    %p77 = scmp.eq.s32.totalorder %s25, 0
    %p78 = por %p76, %p77
    %p79 = scmp.ne.s32.totalorder %s71, %s73
    %p80 = scmp.eq.s32.totalorder %s30, 3
    %p81 = por %p79, %p80
    %p82 = scmp.ne.s32.totalorder %s73, %s74
    %p83 = scmp.eq.s32.totalorder %s30, 0
    %p84 = por %p82, %p83
    %p85 = scmp.ne.s32.totalorder %s73, %s74
    %p86 = scmp.eq.s32.totalorder %s31, 3
    %p87 = por %p85, %p86
    %p89 = scmp.ne.s32.totalorder %s74, %s88
    %p90 = scmp.eq.s32.totalorder %s31, 0
    %p91 = por %p89, %p90
    %s93 = sadd.s32 %s92, 1
    %p96 = scmp.eq.s32.totalorder %s25, 3
    %p97 = scmp.ne.s32.totalorder %s92, %s94
    %p98 = scmp.eq.s32.totalorder %s25, 0
    %p99 = por %p97, %p98
    %p100 = scmp.ne.s32.totalorder %s92, %s94
    %p101 = scmp.eq.s32.totalorder %s30, 3
    %p102 = por %p100, %p101
    %p103 = scmp.ne.s32.totalorder %s94, %s95
    %p104 = scmp.eq.s32.totalorder %s30, 0
    %p105 = por %p103, %p104
    %p106 = scmp.ne.s32.totalorder %s94, %s95
    %p107 = scmp.eq.s32.totalorder %s31, 3
    %p108 = por %p106, %p107
    %p110 = scmp.ne.s32.totalorder %s95, %s109
    %p111 = scmp.eq.s32.totalorder %s31, 0
    %p112 = por %p110, %p111
    %s113 = ssub.s32 %s33, %s40
    %p114 = scmp.eq.s32.totalorder %s113, 0
    %s116 = sadd.s32 %s115, 1
    %s117 = scalar_select %p114, %s115, %s116
    %p120 = pneg %p114
    %p121 = scmp.eq.s32.totalorder %s25, 3
    %p122 = por %p120, %p121
    %p123 = scmp.ne.s32.totalorder %s115, %s118
    %p124 = scmp.eq.s32.totalorder %s25, 0
    %p125 = por %p123, %p124
    %p126 = scmp.ne.s32.totalorder %s115, %s118
    %p127 = scmp.eq.s32.totalorder %s30, 3
    %p128 = por %p126, %p127
    %p129 = scmp.ne.s32.totalorder %s118, %s119
    %p130 = scmp.eq.s32.totalorder %s30, 0
    %p131 = por %p129, %p130
    %p132 = scmp.ne.s32.totalorder %s118, %s119
    %p133 = scmp.eq.s32.totalorder %s31, 3
    %p134 = por %p132, %p133
    %p136 = scmp.ne.s32.totalorder %s119, %s135
    %p137 = scmp.eq.s32.totalorder %s31, 0
    %p138 = por %p136, %p137
    %s139 = ssub.s32 %s33, %s40
    %p140 = scmp.eq.s32.totalorder %s139, 0
    %s142 = sadd.s32 %s141, 1
    %s143 = scalar_select %p140, %s141, %s142
    %p146 = pneg %p140
    %p147 = scmp.eq.s32.totalorder %s25, 3
    %p148 = por %p146, %p147
    %p149 = scmp.ne.s32.totalorder %s141, %s144
    %p150 = scmp.eq.s32.totalorder %s25, 0
    %p151 = por %p149, %p150
    %p152 = scmp.ne.s32.totalorder %s141, %s144
    %p153 = scmp.eq.s32.totalorder %s30, 3
    %p154 = por %p152, %p153
    %p155 = scmp.ne.s32.totalorder %s144, %s145
    %p156 = scmp.eq.s32.totalorder %s30, 0
    %p157 = por %p155, %p156
    %p158 = scmp.ne.s32.totalorder %s144, %s145
    %p159 = scmp.eq.s32.totalorder %s31, 3
    %p160 = por %p158, %p159
    %p162 = scmp.ne.s32.totalorder %s145, %s161
    %p163 = scmp.eq.s32.totalorder %s31, 0
    %p164 = por %p162, %p163
    %s165 = ssub.s32 %s33, %s40
    %p166 = scmp.eq.s32.totalorder %s165, 0
    %s168 = sadd.s32 %s167, 1
    %s169 = scalar_select %p166, %s167, %s168
    %p172 = pneg %p166
    %p173 = scmp.eq.s32.totalorder %s25, 3
    %p174 = por %p172, %p173
    %p175 = scmp.ne.s32.totalorder %s167, %s170
    %p176 = scmp.eq.s32.totalorder %s25, 0
    %p177 = por %p175, %p176
    %p178 = scmp.ne.s32.totalorder %s167, %s170
    %p179 = scmp.eq.s32.totalorder %s30, 3
    %p180 = por %p178, %p179
    %p181 = scmp.ne.s32.totalorder %s170, %s171
    %p182 = scmp.eq.s32.totalorder %s30, 0
    %p183 = por %p181, %p182
    %p184 = scmp.ne.s32.totalorder %s170, %s171
    %p185 = scmp.eq.s32.totalorder %s31, 3
    %p186 = por %p184, %p185
    %p188 = scmp.ne.s32.totalorder %s171, %s187
    %p189 = scmp.eq.s32.totalorder %s31, 0
    %p190 = por %p188, %p189
    %s191 = ssub.s32 %s33, %s40
    %p192 = scmp.eq.s32.totalorder %s191, 0
    %s194 = sadd.s32 %s193, 1
    %s195 = scalar_select %p192, %s193, %s194
    %p198 = pneg %p192
    %p199 = scmp.eq.s32.totalorder %s25, 3
    %p200 = por %p198, %p199
    %p201 = scmp.ne.s32.totalorder %s193, %s196
    %p202 = scmp.eq.s32.totalorder %s25, 0
    %p203 = por %p201, %p202
    %p204 = scmp.ne.s32.totalorder %s193, %s196
    %p205 = scmp.eq.s32.totalorder %s30, 3
    %p206 = por %p204, %p205
    %p207 = scmp.ne.s32.totalorder %s196, %s197
    %p208 = scmp.eq.s32.totalorder %s30, 0
    %p209 = por %p207, %p208
    %p210 = scmp.ne.s32.totalorder %s196, %s197
    %p211 = scmp.eq.s32.totalorder %s31, 3
    %p212 = por %p210, %p211
    %p214 = scmp.ne.s32.totalorder %s197, %s213
    %p215 = scmp.eq.s32.totalorder %s31, 0
    %p216 = por %p214, %p215
    %s217 = ssub.s32 %s33, %s40
    %p218 = scmp.eq.s32.totalorder %s217, 0
    %s220 = sadd.s32 %s219, 1
    %s221 = scalar_select %p218, %s219, %s220
    %p224 = pneg %p218
    %p225 = scmp.eq.s32.totalorder %s25, 3
    %p226 = por %p224, %p225
    %p227 = scmp.ne.s32.totalorder %s219, %s222
    %p228 = scmp.eq.s32.totalorder %s25, 0
    %p229 = por %p227, %p228
    %p230 = scmp.ne.s32.totalorder %s219, %s222
    %p231 = scmp.eq.s32.totalorder %s30, 3
    %p232 = por %p230, %p231
    %p233 = scmp.ne.s32.totalorder %s222, %s223
    %p234 = scmp.eq.s32.totalorder %s30, 0
    %p235 = por %p233, %p234
    %p236 = scmp.ne.s32.totalorder %s222, %s223
    %p237 = scmp.eq.s32.totalorder %s31, 3
    %p238 = por %p236, %p237
    %p240 = scmp.ne.s32.totalorder %s223, %s239
    %p241 = scmp.eq.s32.totalorder %s31, 0
    %p242 = por %p240, %p241
    %s243 = ssub.s32 %s33, %s40
    %p244 = scmp.eq.s32.totalorder %s243, 0
    %s246 = sadd.s32 %s245, 1
    %s247 = scalar_select %p244, %s245, %s246
    %p250 = pneg %p244
    %p251 = scmp.eq.s32.totalorder %s25, 3
    %p252 = por %p250, %p251
    %p253 = scmp.ne.s32.totalorder %s245, %s248
    %p254 = scmp.eq.s32.totalorder %s25, 0
    %p255 = por %p253, %p254
    %p256 = scmp.ne.s32.totalorder %s245, %s248
    %p257 = scmp.eq.s32.totalorder %s30, 3
    %p258 = por %p256, %p257
    %p259 = scmp.ne.s32.totalorder %s248, %s249
    %p260 = scmp.eq.s32.totalorder %s30, 0
    %p261 = por %p259, %p260
    %p262 = scmp.ne.s32.totalorder %s248, %s249
    %p263 = scmp.eq.s32.totalorder %s31, 3
    %p264 = por %p262, %p263
    %p266 = scmp.ne.s32.totalorder %s249, %s265
    %p267 = scmp.eq.s32.totalorder %s31, 0
    %p268 = por %p266, %p267
    %s269 = ssub.s32 %s33, %s40
    %p270 = scmp.eq.s32.totalorder %s269, 0
    %s272 = sadd.s32 %s271, 1
    %s273 = scalar_select %p270, %s271, %s272
    %p276 = pneg %p270
    %p277 = scmp.eq.s32.totalorder %s25, 3
    %p278 = por %p276, %p277
    %p279 = scmp.ne.s32.totalorder %s271, %s274
    %p280 = scmp.eq.s32.totalorder %s25, 0
    %p281 = por %p279, %p280
    %p282 = scmp.ne.s32.totalorder %s271, %s274
    %p283 = scmp.eq.s32.totalorder %s30, 3
    %p284 = por %p282, %p283
    %p285 = scmp.ne.s32.totalorder %s274, %s275
    %p286 = scmp.eq.s32.totalorder %s30, 0
    %p287 = por %p285, %p286
    %p288 = scmp.ne.s32.totalorder %s274, %s275
    %p289 = scmp.eq.s32.totalorder %s31, 3
    %p290 = por %p288, %p289
    %p292 = scmp.ne.s32.totalorder %s275, %s291
    %p293 = scmp.eq.s32.totalorder %s31, 0
    %p294 = por %p292, %p293
    %s295 = ssub.s32 %s33, %s40
    %p296 = scmp.eq.s32.totalorder %s295, 0
    %s298 = sadd.s32 %s297, 1
    %s299 = scalar_select %p296, %s297, %s298
    %p302 = pneg %p296
    %p303 = scmp.eq.s32.totalorder %s25, 3
    %p304 = por %p302, %p303
    %p305 = scmp.ne.s32.totalorder %s297, %s300
    %p306 = scmp.eq.s32.totalorder %s25, 0
    %p307 = por %p305, %p306
    %p308 = scmp.ne.s32.totalorder %s297, %s300
    %p309 = scmp.eq.s32.totalorder %s30, 3
    %p310 = por %p308, %p309
    %p311 = scmp.ne.s32.totalorder %s300, %s301
    %p312 = scmp.eq.s32.totalorder %s30, 0
    %p313 = por %p311, %p312
    %p314 = scmp.ne.s32.totalorder %s300, %s301
    %p315 = scmp.eq.s32.totalorder %s31, 3
    %p316 = por %p314, %p315
    %p318 = scmp.ne.s32.totalorder %s301, %s317
    %p319 = scmp.eq.s32.totalorder %s31, 0
    %p320 = por %p318, %p319
    %s321 = ssub.s32 %s33, %s40
    %p322 = scmp.eq.s32.totalorder %s321, 0
    %s324 = sadd.s32 %s323, 1
    %s325 = scalar_select %p322, %s323, %s324
    %p328 = pneg %p322
    %p329 = scmp.eq.s32.totalorder %s25, 3
    %p330 = por %p328, %p329
    %p331 = scmp.ne.s32.totalorder %s323, %s326
    %p332 = scmp.eq.s32.totalorder %s25, 0
    %p333 = por %p331, %p332
    %p334 = scmp.ne.s32.totalorder %s323, %s326
    %p335 = scmp.eq.s32.totalorder %s30, 3
    %p336 = por %p334, %p335
    %p337 = scmp.ne.s32.totalorder %s326, %s327
    %p338 = scmp.eq.s32.totalorder %s30, 0
    %p339 = por %p337, %p338
    %p340 = scmp.ne.s32.totalorder %s326, %s327
    %p341 = scmp.eq.s32.totalorder %s31, 3
    %p342 = por %p340, %p341
    %p344 = scmp.ne.s32.totalorder %s327, %s343
    %p345 = scmp.eq.s32.totalorder %s31, 0
    %p346 = por %p344, %p345
    %s347 = ssub.s32 %s33, %s40
    %p348 = scmp.eq.s32.totalorder %s347, 0
    %s350 = sadd.s32 %s349, 1
    %s351 = scalar_select %p348, %s349, %s350
    %p354 = pneg %p348
    %p355 = scmp.eq.s32.totalorder %s25, 3
    %p356 = por %p354, %p355
    %p357 = scmp.ne.s32.totalorder %s349, %s352
    %p358 = scmp.eq.s32.totalorder %s25, 0
    %p359 = por %p357, %p358
    %p360 = scmp.ne.s32.totalorder %s349, %s352
    %p361 = scmp.eq.s32.totalorder %s30, 3
    %p362 = por %p360, %p361
    %p363 = scmp.ne.s32.totalorder %s352, %s353
    %p364 = scmp.eq.s32.totalorder %s30, 0
    %p365 = por %p363, %p364
    %p366 = scmp.ne.s32.totalorder %s352, %s353
    %p367 = scmp.eq.s32.totalorder %s31, 3
    %p368 = por %p366, %p367
    %p370 = scmp.ne.s32.totalorder %s353, %s369
    %p371 = scmp.eq.s32.totalorder %s31, 0
    %p372 = por %p370, %p371
    %s373 = ssub.s32 %s33, %s40
    %p374 = scmp.eq.s32.totalorder %s373, 0
    %s376 = sadd.s32 %s375, 1
    %s377 = scalar_select %p374, %s375, %s376
    %p380 = pneg %p374
    %p381 = scmp.eq.s32.totalorder %s25, 3
    %p382 = por %p380, %p381
    %p383 = scmp.ne.s32.totalorder %s375, %s378
    %p384 = scmp.eq.s32.totalorder %s25, 0
    %p385 = por %p383, %p384
    %p386 = scmp.ne.s32.totalorder %s375, %s378
    %p387 = scmp.eq.s32.totalorder %s30, 3
    %p388 = por %p386, %p387
    %p389 = scmp.ne.s32.totalorder %s378, %s379
    %p390 = scmp.eq.s32.totalorder %s30, 0
    %p391 = por %p389, %p390
    %p392 = scmp.ne.s32.totalorder %s378, %s379
    %p393 = scmp.eq.s32.totalorder %s31, 3
    %p394 = por %p392, %p393
    %p396 = scmp.ne.s32.totalorder %s379, %s395
    %p397 = scmp.eq.s32.totalorder %s31, 0
    %p398 = por %p396, %p397
    %s399 = ssub.s32 %s33, %s40
    %p400 = scmp.eq.s32.totalorder %s399, 0
    %s402 = sadd.s32 %s401, 1
    %s403 = scalar_select %p400, %s401, %s402
    %p406 = pneg %p400
    %p407 = scmp.eq.s32.totalorder %s25, 3
    %p408 = por %p406, %p407
    %p409 = scmp.ne.s32.totalorder %s401, %s404
    %p410 = scmp.eq.s32.totalorder %s25, 0
    %p411 = por %p409, %p410
    %p412 = scmp.ne.s32.totalorder %s401, %s404
    %p413 = scmp.eq.s32.totalorder %s30, 3
    %p414 = por %p412, %p413
    %p415 = scmp.ne.s32.totalorder %s404, %s405
    %p416 = scmp.eq.s32.totalorder %s30, 0
    %p417 = por %p415, %p416
    %p418 = scmp.ne.s32.totalorder %s404, %s405
    %p419 = scmp.eq.s32.totalorder %s31, 3
    %p420 = por %p418, %p419
    %p422 = scmp.ne.s32.totalorder %s405, %s421
    %p423 = scmp.eq.s32.totalorder %s31, 0
    %p424 = por %p422, %p423
    %s426 = sadd.s32 %s425, 1
    %p429 = scmp.eq.s32.totalorder %s25, 3
    %p430 = scmp.ne.s32.totalorder %s425, %s427
    %p431 = scmp.eq.s32.totalorder %s25, 0
    %p432 = por %p430, %p431
    %p433 = scmp.ne.s32.totalorder %s425, %s427
    %p434 = scmp.eq.s32.totalorder %s30, 3
    %p435 = por %p433, %p434
    %p436 = scmp.ne.s32.totalorder %s427, %s428
    %p437 = scmp.eq.s32.totalorder %s30, 0
    %p438 = por %p436, %p437
    %p439 = scmp.ne.s32.totalorder %s427, %s428
    %p440 = scmp.eq.s32.totalorder %s31, 3
    %p441 = por %p439, %p440
    %p443 = scmp.ne.s32.totalorder %s428, %s442
    %p444 = scmp.eq.s32.totalorder %s31, 0
    %p445 = por %p443, %p444
    %s447 = sadd.s32 %s446, 1
    %p450 = scmp.eq.s32.totalorder %s25, 3
    %p451 = scmp.ne.s32.totalorder %s446, %s448
    %p452 = scmp.eq.s32.totalorder %s25, 0
    %p453 = por %p451, %p452
    %p454 = scmp.ne.s32.totalorder %s446, %s448
    %p455 = scmp.eq.s32.totalorder %s30, 3
    %p456 = por %p454, %p455
    %p457 = scmp.ne.s32.totalorder %s448, %s449
    %p458 = scmp.eq.s32.totalorder %s30, 0
    %p459 = por %p457, %p458
    %p460 = scmp.ne.s32.totalorder %s448, %s449
    %p461 = scmp.eq.s32.totalorder %s31, 3
    %p462 = por %p460, %p461
    %p464 = scmp.ne.s32.totalorder %s449, %s463
    %p465 = scmp.eq.s32.totalorder %s31, 0
    %p466 = por %p464, %p465
    %s468 = sadd.s32 %s467, 1
    %p471 = scmp.eq.s32.totalorder %s25, 3
    %p472 = scmp.ne.s32.totalorder %s467, %s469
    %p473 = scmp.eq.s32.totalorder %s25, 0
    %p474 = por %p472, %p473
    %p475 = scmp.ne.s32.totalorder %s467, %s469
    %p476 = scmp.eq.s32.totalorder %s30, 3
    %p477 = por %p475, %p476
    %p478 = scmp.ne.s32.totalorder %s469, %s470
    %p479 = scmp.eq.s32.totalorder %s30, 0
    %p480 = por %p478, %p479
    %p481 = scmp.ne.s32.totalorder %s469, %s470
    %p482 = scmp.eq.s32.totalorder %s31, 3
    %p483 = por %p481, %p482
    %p485 = scmp.ne.s32.totalorder %s470, %s484
    %p486 = scmp.eq.s32.totalorder %s31, 0
    %p487 = por %p485, %p486
    %s489 = sadd.s32 %s488, 1
    %p492 = scmp.eq.s32.totalorder %s25, 3
    %p493 = scmp.ne.s32.totalorder %s488, %s490
    %p494 = scmp.eq.s32.totalorder %s25, 0
    %p495 = por %p493, %p494
    %p496 = scmp.ne.s32.totalorder %s488, %s490
    %p497 = scmp.eq.s32.totalorder %s30, 3
    %p498 = por %p496, %p497
    %p499 = scmp.ne.s32.totalorder %s490, %s491
    %p500 = scmp.eq.s32.totalorder %s30, 0
    %p501 = por %p499, %p500
    %p502 = scmp.ne.s32.totalorder %s490, %s491
    %p503 = scmp.eq.s32.totalorder %s31, 3
    %p504 = por %p502, %p503
    %p506 = scmp.ne.s32.totalorder %s491, %s505
    %p507 = scmp.eq.s32.totalorder %s31, 0
    %p508 = por %p506, %p507
    %s509 = ssub.s32 %s32, %s44
    %p510 = scmp.eq.s32.totalorder %s509, 0
    %s512 = sadd.s32 %s511, 1
    %s513 = scalar_select %p510, %s511, %s512
    %p516 = pneg %p510
    %p517 = scmp.eq.s32.totalorder %s25, 3
    %p518 = por %p516, %p517
    %p519 = scmp.ne.s32.totalorder %s511, %s514
    %p520 = scmp.eq.s32.totalorder %s25, 0
    %p521 = por %p519, %p520
    %p522 = scmp.ne.s32.totalorder %s511, %s514
    %p523 = scmp.eq.s32.totalorder %s30, 3
    %p524 = por %p522, %p523
    %p525 = scmp.ne.s32.totalorder %s514, %s515
    %p526 = scmp.eq.s32.totalorder %s30, 0
    %p527 = por %p525, %p526
    %p528 = scmp.ne.s32.totalorder %s514, %s515
    %p529 = scmp.eq.s32.totalorder %s31, 3
    %p530 = por %p528, %p529
    %p532 = scmp.ne.s32.totalorder %s515, %s531
    %p533 = scmp.eq.s32.totalorder %s31, 0
    %p534 = por %p532, %p533
    %p535 = scmp.le.s32.totalorder 1, %s25
    %p536 = scmp.lt.s32.totalorder %s25, 5
    %p537 = pnand %p535, %p536
    %p538 = pneg %p537
    // Predicated region
    $region9: #{deit_forward.1} parent=5 // pred_check
      _
    $region10: #{deit_forward.1} parent=5 // pred_check_branch
      %540 = sbr.rel (%p537) target = $region12
    $region11: #{deit_forward.1} parent=5 // pred_region
      %s541 = ssub.s32 %s25, 1
      // Predicated region
      $region13: #{deit_forward.1} parent=11 // pred_check
        %p542 = pneg %p84
      $region14: #{deit_forward.1} parent=11 // pred_check_branch
        %544 = sbr.rel (%p542) target = $region16
      $region15: #{deit_forward.1} parent=11 // pred_region
        _
      $region16: #{deit_forward.1} parent=11 // pred_fallthru
        _
      // Predicated region
      $region17: #{deit_forward.1} parent=11 // pred_check
        %p545 = pneg %p105
      $region18: #{deit_forward.1} parent=11 // pred_check_branch
        %547 = sbr.rel (%p545) target = $region20
      $region19: #{deit_forward.1} parent=11 // pred_region
        _
      $region20: #{deit_forward.1} parent=11 // pred_fallthru
        _
      // Predicated region
      $region21: #{deit_forward.1} parent=11 // pred_check
        %p548 = pneg %p438
      $region22: #{deit_forward.1} parent=11 // pred_check_branch
        %550 = sbr.rel (%p548) target = $region24
      $region23: #{deit_forward.1} parent=11 // pred_region
        _
      $region24: #{deit_forward.1} parent=11 // pred_fallthru
        _
      // Predicated region
      $region25: #{deit_forward.1} parent=11 // pred_check
        %p551 = pneg %p459
      $region26: #{deit_forward.1} parent=11 // pred_check_branch
        %553 = sbr.rel (%p551) target = $region28
      $region27: #{deit_forward.1} parent=11 // pred_region
        _
      $region28: #{deit_forward.1} parent=11 // pred_fallthru
        _
      // Predicated region
      $region29: #{deit_forward.1} parent=11 // pred_check
        %p554 = pneg %p480
      $region30: #{deit_forward.1} parent=11 // pred_check_branch
        %556 = sbr.rel (%p554) target = $region32
      $region31: #{deit_forward.1} parent=11 // pred_region
        _
      $region32: #{deit_forward.1} parent=11 // pred_fallthru
        _
      // Predicated region
      $region33: #{deit_forward.1} parent=11 // pred_check
        %p557 = pneg %p501
      $region34: #{deit_forward.1} parent=11 // pred_check_branch
        %559 = sbr.rel (%p557) target = $region36
      $region35: #{deit_forward.1} parent=11 // pred_region
        _
      $region36: #{deit_forward.1} parent=11 // pred_fallthru
        _
    $region12: #{deit_forward.1} parent=5 // pred_fallthru
      _
    %p560 = scmp.lt.s32.totalorder %s25, 4
    // Predicated region
    $region37: #{deit_forward.1} parent=5 // pred_check
      %p561 = pneg %p560
    $region38: #{deit_forward.1} parent=5 // pred_check_branch
      %563 = sbr.rel (%p561) target = $region40
    $region39: #{deit_forward.1} parent=5 // pred_region
      // Predicated region
      $region41: #{deit_forward.1} parent=39 // pred_check
        %p564 = pneg %p57
      $region42: #{deit_forward.1} parent=39 // pred_check_branch
        %566 = sbr.rel (%p564) target = $region44
      $region43: #{deit_forward.1} parent=39 // pred_region
        %p567 = scmp.lt.s32.totalorder %s32, 1
        %s568 = scalar_select %p567, %s32, 1
        %s569 = smul.addr %s568, 6
        %s570 = smul.addr %s569, 4
        %s571 = scalar_lea.vmem %s0, %s570
      $region44: #{deit_forward.1} parent=39 // pred_fallthru
        _
      // Predicated region
      $region45: #{deit_forward.1} parent=39 // pred_check
        %p572 = pneg %p125
      $region46: #{deit_forward.1} parent=39 // pred_check_branch
        %574 = sbr.rel (%p572) target = $region48
      $region47: #{deit_forward.1} parent=39 // pred_region
        %p575 = scmp.lt.s32.totalorder %s33, 1
        %s576 = scalar_select %p575, %s33, 1
        %s577 = scalar_lea.vmem %s3, %s576
      $region48: #{deit_forward.1} parent=39 // pred_fallthru
        _
      // Predicated region
      $region49: #{deit_forward.1} parent=39 // pred_check
        %p578 = pneg %p151
      $region50: #{deit_forward.1} parent=39 // pred_check_branch
        %580 = sbr.rel (%p578) target = $region52
      $region51: #{deit_forward.1} parent=39 // pred_region
        %p581 = scmp.lt.s32.totalorder %s33, 1
        %s582 = scalar_select %p581, %s33, 1
        %s583 = scalar_lea.vmem %s4, %s582
      $region52: #{deit_forward.1} parent=39 // pred_fallthru
        _
      // Predicated region
      $region53: #{deit_forward.1} parent=39 // pred_check
        %p584 = pneg %p177
      $region54: #{deit_forward.1} parent=39 // pred_check_branch
        %586 = sbr.rel (%p584) target = $region56
      $region55: #{deit_forward.1} parent=39 // pred_region
        %p587 = scmp.lt.s32.totalorder %s33, 1
        %s588 = scalar_select %p587, %s33, 1
        %s589 = smul.addr %s588, 4
        %s590 = smul.addr %s589, 4
        %s591 = scalar_lea.vmem %s5, %s590
      $region56: #{deit_forward.1} parent=39 // pred_fallthru
        _
      // Predicated region
      $region57: #{deit_forward.1} parent=39 // pred_check
        %p592 = pneg %p203
      $region58: #{deit_forward.1} parent=39 // pred_check_branch
        %594 = sbr.rel (%p592) target = $region60
      $region59: #{deit_forward.1} parent=39 // pred_region
        %p595 = scmp.lt.s32.totalorder %s33, 1
        %s596 = scalar_select %p595, %s33, 1
        %s597 = scalar_lea.vmem %s6, %s596
      $region60: #{deit_forward.1} parent=39 // pred_fallthru
        _
      // Predicated region
      $region61: #{deit_forward.1} parent=39 // pred_check
        %p598 = pneg %p229
      $region62: #{deit_forward.1} parent=39 // pred_check_branch
        %600 = sbr.rel (%p598) target = $region64
      $region63: #{deit_forward.1} parent=39 // pred_region
        %p601 = scmp.lt.s32.totalorder %s33, 1
        %s602 = scalar_select %p601, %s33, 1
        %s603 = smul.addr %s602, 4
        %s604 = smul.addr %s603, 4
        %s605 = scalar_lea.vmem %s7, %s604
      $region64: #{deit_forward.1} parent=39 // pred_fallthru
        _
      // Predicated region
      $region65: #{deit_forward.1} parent=39 // pred_check
        %p606 = pneg %p255
      $region66: #{deit_forward.1} parent=39 // pred_check_branch
        %608 = sbr.rel (%p606) target = $region68
      $region67: #{deit_forward.1} parent=39 // pred_region
        %p609 = scmp.lt.s32.totalorder %s33, 1
        %s610 = scalar_select %p609, %s33, 1
        %s611 = scalar_lea.vmem %s8, %s610
      $region68: #{deit_forward.1} parent=39 // pred_fallthru
        _
      // Predicated region
      $region69: #{deit_forward.1} parent=39 // pred_check
        %p612 = pneg %p281
      $region70: #{deit_forward.1} parent=39 // pred_check_branch
        %614 = sbr.rel (%p612) target = $region72
      $region71: #{deit_forward.1} parent=39 // pred_region
        %p615 = scmp.lt.s32.totalorder %s33, 1
        %s616 = scalar_select %p615, %s33, 1
        %s617 = scalar_lea.vmem %s9, %s616
      $region72: #{deit_forward.1} parent=39 // pred_fallthru
        _
      // Predicated region
      $region73: #{deit_forward.1} parent=39 // pred_check
        %p618 = pneg %p307
      $region74: #{deit_forward.1} parent=39 // pred_check_branch
        %620 = sbr.rel (%p618) target = $region76
      $region75: #{deit_forward.1} parent=39 // pred_region
        %p621 = scmp.lt.s32.totalorder %s33, 1
        %s622 = scalar_select %p621, %s33, 1
        %s623 = scalar_lea.vmem %s10, %s622
      $region76: #{deit_forward.1} parent=39 // pred_fallthru
        _
      // Predicated region
      $region77: #{deit_forward.1} parent=39 // pred_check
        %p624 = pneg %p333
      $region78: #{deit_forward.1} parent=39 // pred_check_branch
        %626 = sbr.rel (%p624) target = $region80
      $region79: #{deit_forward.1} parent=39 // pred_region
        %p627 = scmp.lt.s32.totalorder %s33, 1
        %s628 = scalar_select %p627, %s33, 1
        %s629 = smul.addr %s628, 4
        %s630 = smul.addr %s629, 4
        %s631 = scalar_lea.vmem %s11, %s630
      $region80: #{deit_forward.1} parent=39 // pred_fallthru
        _
      // Predicated region
      $region81: #{deit_forward.1} parent=39 // pred_check
        %p632 = pneg %p359
      $region82: #{deit_forward.1} parent=39 // pred_check_branch
        %634 = sbr.rel (%p632) target = $region84
      $region83: #{deit_forward.1} parent=39 // pred_region
        %p635 = scmp.lt.s32.totalorder %s33, 1
        %s636 = scalar_select %p635, %s33, 1
        %s637 = scalar_lea.vmem %s12, %s636
      $region84: #{deit_forward.1} parent=39 // pred_fallthru
        _
      // Predicated region
      $region85: #{deit_forward.1} parent=39 // pred_check
        %p638 = pneg %p385
      $region86: #{deit_forward.1} parent=39 // pred_check_branch
        %640 = sbr.rel (%p638) target = $region88
      $region87: #{deit_forward.1} parent=39 // pred_region
        %p641 = scmp.lt.s32.totalorder %s33, 1
        %s642 = scalar_select %p641, %s33, 1
        %s643 = smul.addr %s642, 8
        %s644 = smul.addr %s643, 4
        %s645 = scalar_lea.vmem %s13, %s644
      $region88: #{deit_forward.1} parent=39 // pred_fallthru
        _
      // Predicated region
      $region89: #{deit_forward.1} parent=39 // pred_check
        %p646 = pneg %p411
      $region90: #{deit_forward.1} parent=39 // pred_check_branch
        %648 = sbr.rel (%p646) target = $region92
      $region91: #{deit_forward.1} parent=39 // pred_region
        %p649 = scmp.lt.s32.totalorder %s33, 1
        %s650 = scalar_select %p649, %s33, 1
        %s651 = scalar_lea.vmem %s14, %s650
      $region92: #{deit_forward.1} parent=39 // pred_fallthru
        _
    $region40: #{deit_forward.1} parent=5 // pred_fallthru
      _
    %p652 = scmp.le.s32.totalorder 1, %s25
    %p653 = scmp.lt.s32.totalorder %s25, 5
    %p654 = pnand %p652, %p653
    %p655 = pneg %p654
    // Predicated region
    $region93: #{deit_forward.1} parent=5 // pred_check
      _
    $region94: #{deit_forward.1} parent=5 // pred_check_branch
      %657 = sbr.rel (%p654) target = $region96
    $region95: #{deit_forward.1} parent=5 // pred_region
      %s658 = ssub.s32 %s25, 1
      %p659 = scmp.lt.s32.totalorder %s34, 1
      %s660 = scalar_select %p659, %s34, 1
      %s661 = smul.addr %s660, 6
      %s662 = smul.addr %s661, 4
      %s663 = scalar_lea.vmem %s0, %s662
      %p664 = pneg %p63
      %p665 = pneg %p60
      %p666 = pneg %p84
      %p667 = pneg %p81
      %p668 = pneg %p105
      %p669 = pneg %p102
      %p670 = scmp.lt.s32.totalorder %s35, 1
      %s671 = scalar_select %p670, %s35, 1
      %s672 = scalar_lea.vmem %s3, %s671
      %p673 = pneg %p131
      %p674 = pneg %p128
      %p675 = scmp.lt.s32.totalorder %s35, 1
      %s676 = scalar_select %p675, %s35, 1
      %s677 = scalar_lea.vmem %s4, %s676
      %p678 = pneg %p157
      %p679 = pneg %p154
      %p680 = scmp.lt.s32.totalorder %s35, 1
      %s681 = scalar_select %p680, %s35, 1
      %s682 = smul.addr %s681, 4
      %s683 = smul.addr %s682, 4
      %s684 = scalar_lea.vmem %s5, %s683
      %p685 = pneg %p183
      %p686 = pneg %p180
      %p687 = scmp.lt.s32.totalorder %s35, 1
      %s688 = scalar_select %p687, %s35, 1
      %s689 = scalar_lea.vmem %s6, %s688
      %p690 = pneg %p209
      %p691 = pneg %p206
      %p692 = scmp.lt.s32.totalorder %s35, 1
      %s693 = scalar_select %p692, %s35, 1
      %s694 = smul.addr %s693, 4
      %s695 = smul.addr %s694, 4
      %s696 = scalar_lea.vmem %s7, %s695
      %p697 = pneg %p235
      %p698 = pneg %p232
      %p699 = scmp.lt.s32.totalorder %s35, 1
      %s700 = scalar_select %p699, %s35, 1
      %s701 = scalar_lea.vmem %s8, %s700
      %p702 = pneg %p261
      %p703 = pneg %p258
      %p704 = scmp.lt.s32.totalorder %s35, 1
      %s705 = scalar_select %p704, %s35, 1
      %s706 = scalar_lea.vmem %s9, %s705
      %p707 = pneg %p287
      %p708 = pneg %p284
      %p709 = scmp.lt.s32.totalorder %s35, 1
      %s710 = scalar_select %p709, %s35, 1
      %s711 = scalar_lea.vmem %s10, %s710
      %p712 = pneg %p313
      %p713 = pneg %p310
      %p714 = scmp.lt.s32.totalorder %s35, 1
      %s715 = scalar_select %p714, %s35, 1
      %s716 = smul.addr %s715, 4
      %s717 = smul.addr %s716, 4
      %s718 = scalar_lea.vmem %s11, %s717
      %p719 = pneg %p339
      %p720 = pneg %p336
      %p721 = scmp.lt.s32.totalorder %s35, 1
      %s722 = scalar_select %p721, %s35, 1
      %s723 = scalar_lea.vmem %s12, %s722
      %p724 = pneg %p365
      %p725 = pneg %p362
      %p726 = scmp.lt.s32.totalorder %s35, 1
      %s727 = scalar_select %p726, %s35, 1
      %s728 = smul.addr %s727, 8
      %s729 = smul.addr %s728, 4
      %s730 = scalar_lea.vmem %s13, %s729
      %p731 = pneg %p391
      %p732 = pneg %p388
      %p733 = scmp.lt.s32.totalorder %s35, 1
      %s734 = scalar_select %p733, %s35, 1
      %s735 = scalar_lea.vmem %s14, %s734
      %p736 = pneg %p417
      %p737 = pneg %p414
      %p738 = pneg %p438
      %p739 = pneg %p435
      %p740 = pneg %p459
      %p741 = pneg %p456
      %p742 = pneg %p480
      %p743 = pneg %p477
      %p744 = pneg %p501
      %p745 = pneg %p498
      %p746 = pneg %p527
      %p747 = pneg %p524
      %p748 = scmp.lt.s32.totalorder %s34, 1
      %s749 = scalar_select %p748, %s34, 1
      %s750 = smul.addr %s749, 4
      %s751 = scalar_lea.vmem %s19, %s750
      %p752 = scmp.lt.s32.totalorder %s34, 1
      %s753 = scalar_select %p752, %s34, 1
      %s754 = smul.addr %s753, 6
      %s755 = smul.addr %s754, 4
      %s756 = scalar_lea.vmem %s0, %s755
      %p757 = scmp.lt.s32.totalorder %s35, 1
      %s758 = scalar_select %p757, %s35, 1
      %s759 = scalar_lea.vmem %s3, %s758
      %p760 = scmp.lt.s32.totalorder %s35, 1
      %s761 = scalar_select %p760, %s35, 1
      %s762 = scalar_lea.vmem %s4, %s761
      %p763 = scmp.lt.s32.totalorder %s35, 1
      %s764 = scalar_select %p763, %s35, 1
      %s765 = smul.addr %s764, 4
      %s766 = smul.addr %s765, 4
      %s767 = scalar_lea.vmem %s5, %s766
      %p768 = scmp.lt.s32.totalorder %s35, 1
      %s769 = scalar_select %p768, %s35, 1
      %s770 = scalar_lea.vmem %s6, %s769
      %p771 = scmp.lt.s32.totalorder %s35, 1
      %s772 = scalar_select %p771, %s35, 1
      %s773 = smul.addr %s772, 4
      %s774 = smul.addr %s773, 4
      %s775 = scalar_lea.vmem %s7, %s774
      %p776 = scmp.lt.s32.totalorder %s35, 1
      %s777 = scalar_select %p776, %s35, 1
      %s778 = scalar_lea.vmem %s8, %s777
      %p779 = scmp.lt.s32.totalorder %s35, 1
      %s780 = scalar_select %p779, %s35, 1
      %s781 = scalar_lea.vmem %s9, %s780
      %p782 = scmp.lt.s32.totalorder %s35, 1
      %s783 = scalar_select %p782, %s35, 1
      %s784 = scalar_lea.vmem %s10, %s783
      %p785 = scmp.lt.s32.totalorder %s35, 1
      %s786 = scalar_select %p785, %s35, 1
      %s787 = smul.addr %s786, 4
      %s788 = smul.addr %s787, 4
      %s789 = scalar_lea.vmem %s11, %s788
      %p790 = scmp.lt.s32.totalorder %s35, 1
      %s791 = scalar_select %p790, %s35, 1
      %s792 = scalar_lea.vmem %s12, %s791
      %p793 = scmp.lt.s32.totalorder %s35, 1
      %s794 = scalar_select %p793, %s35, 1
      %s795 = smul.addr %s794, 8
      %s796 = smul.addr %s795, 4
      %s797 = scalar_lea.vmem %s13, %s796
      %p798 = scmp.lt.s32.totalorder %s35, 1
      %s799 = scalar_select %p798, %s35, 1
      %s800 = scalar_lea.vmem %s14, %s799
      %p801 = scmp.lt.s32.totalorder %s34, 1
      %s802 = scalar_select %p801, %s34, 1
      %s803 = smul.addr %s802, 4
      %s804 = scalar_lea.vmem %s19, %s803
      %p806 = scmp.eq.s32.totalorder %s35, 0
      // Predicated region
      $region97: #{deit_forward.1} parent=95 // pred_check
        %p807 = pneg %p806
      $region98: #{deit_forward.1} parent=95 // pred_check_branch
        %809 = sbr.rel (%p807) target = $region100
      $region99: #{deit_forward.1} parent=95 // pred_region
        %v810 = vld [vmem:[%s756] sm:$0x77]
        %v811 = vld [vmem:[%s756 + $0x8] sm:$0x77]
        %v812 = vld [vmem:[%s756 + $0x10] sm:$0x77]
        %v813 = vld [vmem:[%s1] sm:$0xf]
        %v814 = vld [vmem:[%s1 + $0x4] sm:$0xf]
        %v815 = vld [vmem:[%s1 + $0x8] sm:$0xf]
        %v816 = vld [vmem:[%s1 + $0xc] sm:$0xf]
        %v817 = vld [vmem:[%s1 + $0x10] sm:$0xf]
        %v818 = vld [vmem:[%s1 + $0x14] sm:$0xf]
        %v819 = vld [vmem:[%s1 + $0x18] sm:$0xf]
        %v820 = vld [vmem:[%s1 + $0x1c] sm:$0xf]
        %v821 = vld [vmem:[%s1 + $0x20] sm:$0xf]
        %v822 = vld [vmem:[%s1 + $0x24] sm:$0xf]
        %v823 = vld [vmem:[%s1 + $0x28] sm:$0xf]
        %v824 = vld [vmem:[%s1 + $0x2c] sm:$0xf]
        %v825 = vld [vmem:[%s1 + $0x30] sm:$0xf]
        %v826 = vld [vmem:[%s1 + $0x34] sm:$0xf]
        %v827 = vld [vmem:[%s1 + $0x38] sm:$0xf]
        %v828 = vld [vmem:[%s1 + $0x3c] sm:$0xf]
        %v829 = vld [vmem:[%s1 + $0x40] sm:$0xf]
        %v830 = vld [vmem:[%s1 + $0x44] sm:$0xf]
        %v831 = vld [vmem:[%s1 + $0x48] sm:$0xf]
        %v832 = vld [vmem:[%s1 + $0x4c] sm:$0xf]
        %v833 = vld [vmem:[%s1 + $0x50] sm:$0xf]
        %v834 = vld [vmem:[%s1 + $0x54] sm:$0xf]
        %v835 = vld [vmem:[%s1 + $0x58] sm:$0xf]
        %v836 = vld [vmem:[%s1 + $0x5c] sm:$0xf]
        %v837 = vld [vmem:[%s1 + $0x60] sm:$0xf]
        %v838 = vld [vmem:[%s1 + $0x64] sm:$0xf]
        %v839 = vld [vmem:[%s1 + $0x68] sm:$0xf]
        %v840 = vld [vmem:[%s1 + $0x6c] sm:$0xf]
        %v841 = vld [vmem:[%s1 + $0x70] sm:$0xf]
        %v842 = vld [vmem:[%s1 + $0x74] sm:$0xf]
        %v843 = vld [vmem:[%s1 + $0x78] sm:$0xf]
        %v844 = vld [vmem:[%s1 + $0x7c] sm:$0xf]
        %v845 = vld [vmem:[%s1 + $0x80] sm:$0xf]
        %v846 = vld [vmem:[%s1 + $0x84] sm:$0xf]
        %v847 = vld [vmem:[%s1 + $0x88] sm:$0xf]
        %v848 = vld [vmem:[%s1 + $0x8c] sm:$0xf]
        %v849 = vld [vmem:[%s1 + $0x90] sm:$0xf]
        %v850 = vld [vmem:[%s1 + $0x94] sm:$0xf]
        %v851 = vld [vmem:[%s1 + $0x98] sm:$0xf]
        %v852 = vld [vmem:[%s1 + $0x9c] sm:$0xf]
        %v853 = vld [vmem:[%s1 + $0xa0] sm:$0xf]
        %v854 = vld [vmem:[%s1 + $0xa4] sm:$0xf]
        %v855 = vld [vmem:[%s1 + $0xa8] sm:$0xf]
        %v856 = vld [vmem:[%s1 + $0xac] sm:$0xf]
        %v857 = vld [vmem:[%s1 + $0xb0] sm:$0xf]
        %v858 = vld [vmem:[%s1 + $0xb4] sm:$0xf]
        %v859 = vld [vmem:[%s1 + $0xb8] sm:$0xf]
        %v860 = vld [vmem:[%s1 + $0xbc] sm:$0xf]
        %v861 = vld [vmem:[%s1 + $0xc0] sm:$0xf]
        %v862 = vld [vmem:[%s1 + $0xc4] sm:$0xf]
        %v863 = vld [vmem:[%s1 + $0xc8] sm:$0xf]
        %v864 = vld [vmem:[%s1 + $0xcc] sm:$0xf]
        %v865 = vld [vmem:[%s1 + $0xd0] sm:$0xf]
        %v866 = vld [vmem:[%s1 + $0xd4] sm:$0xf]
        %v867 = vld [vmem:[%s1 + $0xd8] sm:$0xf]
        %v868 = vld [vmem:[%s1 + $0xdc] sm:$0xf]
        %v869 = vld [vmem:[%s1 + $0xe0] sm:$0xf]
        %v870 = vld [vmem:[%s1 + $0xe4] sm:$0xf]
        %v871 = vld [vmem:[%s1 + $0xe8] sm:$0xf]
        %v872 = vld [vmem:[%s1 + $0xec] sm:$0xf]
        %v873 = vld [vmem:[%s1 + $0xf0] sm:$0xf]
        %v874 = vld [vmem:[%s1 + $0xf4] sm:$0xf]
        %v875 = vld [vmem:[%s1 + $0xf8] sm:$0xf]
        %v876 = vld [vmem:[%s1 + $0xfc] sm:$0xf]
        %v877 = vld [vmem:[%s1 + $0x100] sm:$0xf]
        %v878 = vld [vmem:[%s1 + $0x104] sm:$0xf]
        %v879 = vld [vmem:[%s1 + $0x108] sm:$0xf]
        %v880 = vld [vmem:[%s1 + $0x10c] sm:$0xf]
        %v881 = vld [vmem:[%s1 + $0x110] sm:$0xf]
        %v882 = vld [vmem:[%s1 + $0x114] sm:$0xf]
        %v883 = vld [vmem:[%s1 + $0x118] sm:$0xf]
        %v884 = vld [vmem:[%s1 + $0x11c] sm:$0xf]
        %v885 = vld [vmem:[%s1 + $0x120] sm:$0xf]
        %v886 = vld [vmem:[%s1 + $0x124] sm:$0xf]
        %v887 = vld [vmem:[%s1 + $0x128] sm:$0xf]
        %v888 = vld [vmem:[%s1 + $0x12c] sm:$0xf]
        %v889 = vld [vmem:[%s1 + $0x130] sm:$0xf]
        %v890 = vld [vmem:[%s1 + $0x134] sm:$0xf]
        %v891 = vld [vmem:[%s1 + $0x138] sm:$0xf]
        %v892 = vld [vmem:[%s1 + $0x13c] sm:$0xf]
        %v893 = vld [vmem:[%s1 + $0x140] sm:$0xf]
        %v894 = vld [vmem:[%s1 + $0x144] sm:$0xf]
        %v895 = vld [vmem:[%s1 + $0x148] sm:$0xf]
        %v896 = vld [vmem:[%s1 + $0x14c] sm:$0xf]
        %v897 = vld [vmem:[%s1 + $0x150] sm:$0xf]
        %v898 = vld [vmem:[%s1 + $0x154] sm:$0xf]
        %v899 = vld [vmem:[%s1 + $0x158] sm:$0xf]
        %v900 = vld [vmem:[%s1 + $0x15c] sm:$0xf]
        %v901 = vld [vmem:[%s1 + $0x160] sm:$0xf]
        %v902 = vld [vmem:[%s1 + $0x164] sm:$0xf]
        %v903 = vld [vmem:[%s1 + $0x168] sm:$0xf]
        %v904 = vld [vmem:[%s1 + $0x16c] sm:$0xf]
        %v905 = vld [vmem:[%s1 + $0x170] sm:$0xf]
        %v906 = vld [vmem:[%s1 + $0x174] sm:$0xf]
        %v907 = vld [vmem:[%s1 + $0x178] sm:$0xf]
        %v908 = vld [vmem:[%s1 + $0x17c] sm:$0xf]
        %v909 = vld [vmem:[%s2] sm:$0x3f]
        %v913 = vunpack.c.l.b16 %v810
        %v914 = vunpack.c.h.b16 %v810
        %v915 = vunpack.c.l.b16 %v811
        %v916 = vunpack.c.h.b16 %v811
        %v917 = vunpack.c.l.b16 %v812
        %v918 = vunpack.c.h.b16 %v812
        %v919 = vpack.c.b16 %v913, %v913
        %v920 = vpack.c.b16 %v914, %v914
        %v921 = vpack.c.b16 %v915, %v915
        %v922 = vpack.c.b16 %v916, %v916
        %v923 = vpack.c.b16 %v917, %v917
        %v924 = vpack.c.b16 %v918, %v918
        %v1027 = vunpack.c.l.b16 %v813
        %v1028 = vunpack.c.l.b16 %v814
        %v1029 = vunpack.c.l.b16 %v815
        %v1030 = vunpack.c.l.b16 %v816
        %v1031 = vunpack.c.l.b16 %v817
        %v1032 = vunpack.c.l.b16 %v818
        %v1033 = vunpack.c.l.b16 %v819
        %v1034 = vunpack.c.l.b16 %v820
        %v1035 = vunpack.c.l.b16 %v821
        %v1036 = vunpack.c.l.b16 %v822
        %v1037 = vunpack.c.l.b16 %v823
        %v1038 = vunpack.c.l.b16 %v824
        %v1039 = vunpack.c.l.b16 %v825
        %v1040 = vunpack.c.l.b16 %v826
        %v1041 = vunpack.c.l.b16 %v827
        %v1042 = vunpack.c.l.b16 %v828
        %v1043 = vunpack.c.l.b16 %v829
        %v1044 = vunpack.c.l.b16 %v830
        %v1045 = vunpack.c.l.b16 %v831
        %v1046 = vunpack.c.l.b16 %v832
        %v1047 = vunpack.c.l.b16 %v833
        %v1048 = vunpack.c.l.b16 %v834
        %v1049 = vunpack.c.l.b16 %v835
        %v1050 = vunpack.c.l.b16 %v836
        %v1051 = vunpack.c.l.b16 %v837
        %v1052 = vunpack.c.l.b16 %v838
        %v1053 = vunpack.c.l.b16 %v839
        %v1054 = vunpack.c.l.b16 %v840
        %v1055 = vunpack.c.l.b16 %v841
        %v1056 = vunpack.c.l.b16 %v842
        %v1057 = vunpack.c.l.b16 %v843
        %v1058 = vunpack.c.l.b16 %v844
        %v1059 = vunpack.c.l.b16 %v845
        %v1060 = vunpack.c.l.b16 %v846
        %v1061 = vunpack.c.l.b16 %v847
        %v1062 = vunpack.c.l.b16 %v848
        %v1063 = vunpack.c.l.b16 %v849
        %v1064 = vunpack.c.l.b16 %v850
        %v1065 = vunpack.c.l.b16 %v851
        %v1066 = vunpack.c.l.b16 %v852
        %v1067 = vunpack.c.l.b16 %v853
        %v1068 = vunpack.c.l.b16 %v854
        %v1069 = vunpack.c.l.b16 %v855
        %v1070 = vunpack.c.l.b16 %v856
        %v1071 = vunpack.c.l.b16 %v857
        %v1072 = vunpack.c.l.b16 %v858
        %v1073 = vunpack.c.l.b16 %v859
        %v1074 = vunpack.c.l.b16 %v860
        %v1075 = vunpack.c.l.b16 %v861
        %v1076 = vunpack.c.l.b16 %v862
        %v1077 = vunpack.c.l.b16 %v863
        %v1078 = vunpack.c.l.b16 %v864
        %v1079 = vunpack.c.l.b16 %v865
        %v1080 = vunpack.c.l.b16 %v866
        %v1081 = vunpack.c.l.b16 %v867
        %v1082 = vunpack.c.l.b16 %v868
        %v1083 = vunpack.c.l.b16 %v869
        %v1084 = vunpack.c.l.b16 %v870
        %v1085 = vunpack.c.l.b16 %v871
        %v1086 = vunpack.c.l.b16 %v872
        %v1087 = vunpack.c.l.b16 %v873
        %v1088 = vunpack.c.l.b16 %v874
        %v1089 = vunpack.c.l.b16 %v875
        %v1090 = vunpack.c.l.b16 %v876
        %v1091 = vunpack.c.l.b16 %v877
        %v1092 = vunpack.c.l.b16 %v878
        %v1093 = vunpack.c.l.b16 %v879
        %v1094 = vunpack.c.l.b16 %v880
        %v1095 = vunpack.c.l.b16 %v881
        %v1096 = vunpack.c.l.b16 %v882
        %v1097 = vunpack.c.l.b16 %v883
        %v1098 = vunpack.c.l.b16 %v884
        %v1099 = vunpack.c.l.b16 %v885
        %v1100 = vunpack.c.l.b16 %v886
        %v1101 = vunpack.c.l.b16 %v887
        %v1102 = vunpack.c.l.b16 %v888
        %v1103 = vunpack.c.l.b16 %v889
        %v1104 = vunpack.c.l.b16 %v890
        %v1105 = vunpack.c.l.b16 %v891
        %v1106 = vunpack.c.l.b16 %v892
        %v1107 = vunpack.c.l.b16 %v893
        %v1108 = vunpack.c.l.b16 %v894
        %v1109 = vunpack.c.l.b16 %v895
        %v1110 = vunpack.c.l.b16 %v896
        %v1111 = vunpack.c.l.b16 %v897
        %v1112 = vunpack.c.l.b16 %v898
        %v1113 = vunpack.c.l.b16 %v899
        %v1114 = vunpack.c.l.b16 %v900
        %v1115 = vunpack.c.l.b16 %v901
        %v1116 = vunpack.c.l.b16 %v902
        %v1117 = vunpack.c.l.b16 %v903
        %v1118 = vunpack.c.l.b16 %v904
        %v1119 = vunpack.c.l.b16 %v905
        %v1120 = vunpack.c.l.b16 %v906
        %v1121 = vunpack.c.l.b16 %v907
        %v1122 = vunpack.c.l.b16 %v908
        %v1123 = vpack.c.b16 %v1028, %v1027
        %v1124 = vpack.c.b16 %v1030, %v1029
        %v1125 = vpack.c.b16 %v1032, %v1031
        %v1126 = vpack.c.b16 %v1034, %v1033
        %v1127 = vpack.c.b16 %v1036, %v1035
        %v1128 = vpack.c.b16 %v1038, %v1037
        %v1129 = vpack.c.b16 %v1040, %v1039
        %v1130 = vpack.c.b16 %v1042, %v1041
        %v1131 = vpack.c.b16 %v1044, %v1043
        %v1132 = vpack.c.b16 %v1046, %v1045
        %v1133 = vpack.c.b16 %v1048, %v1047
        %v1134 = vpack.c.b16 %v1050, %v1049
        %v1135 = vpack.c.b16 %v1052, %v1051
        %v1136 = vpack.c.b16 %v1054, %v1053
        %v1137 = vpack.c.b16 %v1056, %v1055
        %v1138 = vpack.c.b16 %v1058, %v1057
        %v1139 = vpack.c.b16 %v1060, %v1059
        %v1140 = vpack.c.b16 %v1062, %v1061
        %v1141 = vpack.c.b16 %v1064, %v1063
        %v1142 = vpack.c.b16 %v1066, %v1065
        %v1143 = vpack.c.b16 %v1068, %v1067
        %v1144 = vpack.c.b16 %v1070, %v1069
        %v1145 = vpack.c.b16 %v1072, %v1071
        %v1146 = vpack.c.b16 %v1074, %v1073
        %v1147 = vpack.c.b16 %v1076, %v1075
        %v1148 = vpack.c.b16 %v1078, %v1077
        %v1149 = vpack.c.b16 %v1080, %v1079
        %v1150 = vpack.c.b16 %v1082, %v1081
        %v1151 = vpack.c.b16 %v1084, %v1083
        %v1152 = vpack.c.b16 %v1086, %v1085
        %v1153 = vpack.c.b16 %v1088, %v1087
        %v1154 = vpack.c.b16 %v1090, %v1089
        %v1155 = vpack.c.b16 %v1092, %v1091
        %v1156 = vpack.c.b16 %v1094, %v1093
        %v1157 = vpack.c.b16 %v1096, %v1095
        %v1158 = vpack.c.b16 %v1098, %v1097
        %v1159 = vpack.c.b16 %v1100, %v1099
        %v1160 = vpack.c.b16 %v1102, %v1101
        %v1161 = vpack.c.b16 %v1104, %v1103
        %v1162 = vpack.c.b16 %v1106, %v1105
        %v1163 = vpack.c.b16 %v1108, %v1107
        %v1164 = vpack.c.b16 %v1110, %v1109
        %v1165 = vpack.c.b16 %v1112, %v1111
        %v1166 = vpack.c.b16 %v1114, %v1113
        %v1167 = vpack.c.b16 %v1116, %v1115
        %v1168 = vpack.c.b16 %v1118, %v1117
        %v1169 = vpack.c.b16 %v1120, %v1119
        %v1170 = vpack.c.b16 %v1122, %v1121
        %1219 = vmatprep.subr.bf16.mxu0 0
        %1220 = vmatpush1.bf16.msra.mxu0 %v1130
        %1221 = vmatprep.subr.bf16.mxu0 0
        %1222 = vmatpush1.bf16.msra.mxu0 %v1129
        %1223 = vmatprep.subr.bf16.mxu0 0
        %1224 = vmatpush1.bf16.msra.mxu0 %v1128
        %1225 = vmatprep.subr.bf16.mxu0 0
        %1226 = vmatpush1.bf16.msra.mxu0 %v1127
        %1227 = vmatprep.subr.bf16.mxu0 0
        %1228 = vmatpush1.bf16.msra.mxu0 %v1126
        %1229 = vmatprep.subr.bf16.mxu0 0
        %1230 = vmatpush1.bf16.msra.mxu0 %v1125
        %1231 = vmatprep.subr.bf16.mxu0 0
        %1232 = vmatpush1.bf16.msra.mxu0 %v1124
        %1233 = vmatprep.subr.bf16.mxu0 0
        %1234 = vmatpush1.bf16.msra.mxu0 %v1123
        %1235 = vmatprep.subr.bf16.mxu0 0
        %1236 = vmatpush2.bf16.msra.mxu0 %v1138
        %1237 = vmatprep.subr.bf16.mxu0 0
        %1238 = vmatpush2.bf16.msra.mxu0 %v1137
        %1239 = vmatprep.subr.bf16.mxu0 0
        %1240 = vmatpush2.bf16.msra.mxu0 %v1136
        %1241 = vmatprep.subr.bf16.mxu0 0
        %1242 = vmatpush2.bf16.msra.mxu0 %v1135
        %1243 = vmatprep.subr.bf16.mxu0 0
        %1244 = vmatpush2.bf16.msra.mxu0 %v1134
        %1245 = vmatprep.subr.bf16.mxu0 0
        %1246 = vmatpush2.bf16.msra.mxu0 %v1133
        %1247 = vmatprep.subr.bf16.mxu0 0
        %1248 = vmatpush2.bf16.msra.mxu0 %v1132
        %1249 = vmatprep.subr.bf16.mxu0 0
        %1250 = vmatpush2.bf16.msra.mxu0 %v1131
        %1251 = vmatprep.mubr.bf16.mxu0 %v920
        %1252 = vmatmul.mubr.bf16.gmra.mxu0 %v919
        %v1253 = vpop.f32.mrf.mxu0
        %v1254 = vadd.f32 %v909, %v1253
        %v1255 = vpop.f32.mrf.mxu0
        %v1256 = vpop.f32.mrf.mxu0
        %v1257 = vpop.f32.mrf.mxu0
        %1258 = vdwg.mxu0
        %1259 = vmatprep.subr.bf16.mxu0 0
        %1260 = vmatpush1.bf16.msra.mxu0 %v1146
        %1261 = vmatprep.subr.bf16.mxu0 0
        %1262 = vmatpush1.bf16.msra.mxu0 %v1145
        %1263 = vmatprep.subr.bf16.mxu0 0
        %1264 = vmatpush1.bf16.msra.mxu0 %v1144
        %1265 = vmatprep.subr.bf16.mxu0 0
        %1266 = vmatpush1.bf16.msra.mxu0 %v1143
        %1267 = vmatprep.subr.bf16.mxu0 0
        %1268 = vmatpush1.bf16.msra.mxu0 %v1142
        %1269 = vmatprep.subr.bf16.mxu0 0
        %1270 = vmatpush1.bf16.msra.mxu0 %v1141
        %1271 = vmatprep.subr.bf16.mxu0 0
        %1272 = vmatpush1.bf16.msra.mxu0 %v1140
        %1273 = vmatprep.subr.bf16.mxu0 0
        %1274 = vmatpush1.bf16.msra.mxu0 %v1139
        %1275 = vmatprep.subr.bf16.mxu0 0
        %1276 = vmatpush2.bf16.msra.mxu0 %v1154
        %1277 = vmatprep.subr.bf16.mxu0 0
        %1278 = vmatpush2.bf16.msra.mxu0 %v1153
        %1279 = vmatprep.subr.bf16.mxu0 0
        %1280 = vmatpush2.bf16.msra.mxu0 %v1152
        %1281 = vmatprep.subr.bf16.mxu0 0
        %1282 = vmatpush2.bf16.msra.mxu0 %v1151
        %1283 = vmatprep.subr.bf16.mxu0 0
        %1284 = vmatpush2.bf16.msra.mxu0 %v1150
        %1285 = vmatprep.subr.bf16.mxu0 0
        %1286 = vmatpush2.bf16.msra.mxu0 %v1149
        %1287 = vmatprep.subr.bf16.mxu0 0
        %1288 = vmatpush2.bf16.msra.mxu0 %v1148
        %1289 = vmatprep.subr.bf16.mxu0 0
        %1290 = vmatpush2.bf16.msra.mxu0 %v1147
        %1291 = vmatprep.mubr.bf16.mxu0 %v922
        %1292 = vmatmul.mubr.bf16.gmra.mxu0 %v921
        %v1293 = vpop.f32.mrf.mxu0
        %v1294 = vadd.f32 %v1254, %v1293
        %v1295 = vpop.f32.mrf.mxu0
        %v1296 = vpop.f32.mrf.mxu0
        %v1297 = vpop.f32.mrf.mxu0
        %1298 = vdwg.mxu0
        %1299 = vmatprep.subr.bf16.mxu0 0
        %1300 = vmatpush1.bf16.msra.mxu0 %v1162
        %1301 = vmatprep.subr.bf16.mxu0 0
        %1302 = vmatpush1.bf16.msra.mxu0 %v1161
        %1303 = vmatprep.subr.bf16.mxu0 0
        %1304 = vmatpush1.bf16.msra.mxu0 %v1160
        %1305 = vmatprep.subr.bf16.mxu0 0
        %1306 = vmatpush1.bf16.msra.mxu0 %v1159
        %1307 = vmatprep.subr.bf16.mxu0 0
        %1308 = vmatpush1.bf16.msra.mxu0 %v1158
        %1309 = vmatprep.subr.bf16.mxu0 0
        %1310 = vmatpush1.bf16.msra.mxu0 %v1157
        %1311 = vmatprep.subr.bf16.mxu0 0
        %1312 = vmatpush1.bf16.msra.mxu0 %v1156
        %1313 = vmatprep.subr.bf16.mxu0 0
        %1314 = vmatpush1.bf16.msra.mxu0 %v1155
        %1315 = vmatprep.subr.bf16.mxu0 0
        %1316 = vmatpush2.bf16.msra.mxu0 %v1170
        %1317 = vmatprep.subr.bf16.mxu0 0
        %1318 = vmatpush2.bf16.msra.mxu0 %v1169
        %1319 = vmatprep.subr.bf16.mxu0 0
        %1320 = vmatpush2.bf16.msra.mxu0 %v1168
        %1321 = vmatprep.subr.bf16.mxu0 0
        %1322 = vmatpush2.bf16.msra.mxu0 %v1167
        %1323 = vmatprep.subr.bf16.mxu0 0
        %1324 = vmatpush2.bf16.msra.mxu0 %v1166
        %1325 = vmatprep.subr.bf16.mxu0 0
        %1326 = vmatpush2.bf16.msra.mxu0 %v1165
        %1327 = vmatprep.subr.bf16.mxu0 0
        %1328 = vmatpush2.bf16.msra.mxu0 %v1164
        %1329 = vmatprep.subr.bf16.mxu0 0
        %1330 = vmatpush2.bf16.msra.mxu0 %v1163
        %1331 = vmatprep.mubr.bf16.mxu0 %v924
        %1332 = vmatmul.mubr.bf16.gmra.mxu0 %v923
        %v1333 = vpop.f32.mrf.mxu0
        %v1334 = vadd.f32 %v1294, %v1333
        %v1335 = vpop.f32.mrf.mxu0
        %v1336 = vpop.f32.mrf.mxu0
        %v1337 = vpop.f32.mrf.mxu0
        %1338 = vdwg.mxu0
        %vm1339 = vcmask 259072
        %1340 = vst.msk [vmem:[#allocation2] sm:$0x3f] %vm1339, %v1334
      $region100: #{deit_forward.1} parent=95 // pred_fallthru
        _
      %v1341 = vld [vmem:[#allocation2] sm:$0x3f]
      %v1342 = vld [vmem:[%s759] sm:$0x1]
      %v1343 = vld [vmem:[%s762] sm:$0x1]
      %vm1344 = vcmask 259072
      %v1345 = vsel %vm1344, %v1341, 0.0
      %1346 = vadd.xlane.f32.xlu0 %v1345
      %v1347 = vpop.xlane.xlu0 %1346
      %v1348 = vrcp.pop 32.0
      %v1349 = vmul.f32 %v1347, %v1348
      %v1350 = vsub.f32 %v1341, %v1349
      %v1351 = vmul.f32 %v1350, %v1350
      %v1352 = vsel %vm1344, %v1351, 0.0
      %1353 = vadd.xlane.f32.xlu0 %v1352
      %v1354 = vpop.xlane.xlu0 %1353
      %v1355 = vmul.f32 %v1354, %v1348
      %v1356 = vadd.f32 %v1355, 1e-12
      %v1357 = vrsqrt.pop %v1356
      %v1358 = vmul.f32 %v1350, %v1357
      %v1360 = vlaneseq
      %v1361 = vshrl.u32 %v1360, 7
      %v1362 = vsub.s32 0, %v1361
      %v1363 = vrot.slane %v1342, %v1362
      %v1365 = vmul.f32 %v1358, %v1363
      %v1367 = vlaneseq
      %v1368 = vshrl.u32 %v1367, 7
      %v1369 = vsub.s32 0, %v1368
      %v1370 = vrot.slane %v1343, %v1369
      %v1372 = vadd.f32 %v1365, %v1370
      %v1373 = vpack.c.bf16 %v1372, %v1372
      %v1374 = vld [vmem:[%s767] sm:$0xf]
      %v1375 = vld [vmem:[%s767 + $0x4] sm:$0xf]
      %v1376 = vld [vmem:[%s767 + $0x8] sm:$0xf]
      %v1377 = vld [vmem:[%s767 + $0xc] sm:$0xf]
      %v1378 = vld [vmem:[%s770] sm:$0x1]
      %v1380 = vlaneseq
      %v1381 = vshrl.u32 %v1380, 7
      %v1382 = vsub.s32 0, %v1381
      %v1383 = vrot.slane %v1378, %v1382
      %v1389 = vunpack.c.l.b16 %v1374
      %v1390 = vunpack.c.l.b16 %v1375
      %v1391 = vunpack.c.l.b16 %v1376
      %v1392 = vunpack.c.l.b16 %v1377
      %v1393 = vpack.c.b16 %v1390, %v1389
      %v1394 = vpack.c.b16 %v1392, %v1391
      %vm1397 = vcmask 261120
      %v1399 = vsel %vm1397, %v1373, 0
      %1401 = vmatprep.subr.bf16.mxu0 0
      %1402 = vmatpush1.bf16.msra.mxu0 0
      %1403 = vmatprep.subr.bf16.mxu0 0
      %1404 = vmatpush1.bf16.msra.mxu0 0
      %1405 = vmatprep.subr.bf16.mxu0 0
      %1406 = vmatpush1.bf16.msra.mxu0 0
      %1407 = vmatprep.subr.bf16.mxu0 0
      %1408 = vmatpush1.bf16.msra.mxu0 0
      %1409 = vmatprep.subr.bf16.mxu0 0
      %1410 = vmatpush1.bf16.msra.mxu0 0
      %1411 = vmatprep.subr.bf16.mxu0 0
      %1412 = vmatpush1.bf16.msra.mxu0 0
      %1413 = vmatprep.subr.bf16.mxu0 0
      %1414 = vmatpush1.bf16.msra.mxu0 %v1394
      %1415 = vmatprep.subr.bf16.mxu0 0
      %1416 = vmatpush1.bf16.msra.mxu0 %v1393
      %1417 = vmatprep.subr.bf16.mxu0 0
      %1418 = vmatpush2.bf16.msra.mxu0 0
      %1419 = vmatprep.subr.bf16.mxu0 0
      %1420 = vmatpush2.bf16.msra.mxu0 0
      %1421 = vmatprep.subr.bf16.mxu0 0
      %1422 = vmatpush2.bf16.msra.mxu0 0
      %1423 = vmatprep.subr.bf16.mxu0 0
      %1424 = vmatpush2.bf16.msra.mxu0 0
      %1425 = vmatprep.subr.bf16.mxu0 0
      %1426 = vmatpush2.bf16.msra.mxu0 0
      %1427 = vmatprep.subr.bf16.mxu0 0
      %1428 = vmatpush2.bf16.msra.mxu0 0
      %1429 = vmatprep.subr.bf16.mxu0 0
      %1430 = vmatpush2.bf16.msra.mxu0 0
      %1431 = vmatprep.subr.bf16.mxu0 0
      %1432 = vmatpush2.bf16.msra.mxu0 0
      %1433 = vmatprep.mubr.bf16.mxu0 0
      %1434 = vmatmul.mubr.bf16.gmra.mxu0 %v1399
      %v1435 = vpop.f32.mrf.mxu0
      %v1436 = vadd.f32 %v1383, %v1435
      %v1437 = vpop.f32.mrf.mxu0
      %v1438 = vpop.f32.mrf.mxu0
      %v1439 = vpop.f32.mrf.mxu0
      %1440 = vdwg.mxu0
      %v1441 = vpack.c.bf16 %v1436, %v1436
      %1443 = vrot.lane.b32.xlu0 %v1441, 96
      %v1444 = vpop.permute.xlu0 %1443
      %vm1445 = vcmask 130048
      %v1447 = vsel %vm1445, %v1441, 0
      %v1450 = vsel %vm1445, %v1444, 0
      %1452 = vmatprep.subr.bf16.mxu0 0
      %1453 = vmatpush1.bf16.xpose.msra.mxu0 0
      %1454 = vmatprep.subr.bf16.mxu0 0
      %1455 = vmatpush1.bf16.xpose.msra.mxu0 0
      %1456 = vmatprep.subr.bf16.mxu0 0
      %1457 = vmatpush1.bf16.xpose.msra.mxu0 0
      %1458 = vmatprep.subr.bf16.mxu0 0
      %1459 = vmatpush1.bf16.xpose.msra.mxu0 0
      %1460 = vmatprep.subr.bf16.mxu0 0
      %1461 = vmatpush1.bf16.xpose.msra.mxu0 0
      %1462 = vmatprep.subr.bf16.mxu0 0
      %1463 = vmatpush1.bf16.xpose.msra.mxu0 0
      %1464 = vmatprep.subr.bf16.mxu0 0
      %1465 = vmatpush1.bf16.xpose.msra.mxu0 0
      %1466 = vmatprep.subr.bf16.mxu0 0
      %1467 = vmatpush1.bf16.xpose.msra.mxu0 %v1450
      %1468 = vmatprep.subr.bf16.mxu0 0
      %1469 = vmatpush2.bf16.xpose.msra.mxu0 0
      %1470 = vmatprep.subr.bf16.mxu0 0
      %1471 = vmatpush2.bf16.xpose.msra.mxu0 0
      %1472 = vmatprep.subr.bf16.mxu0 0
      %1473 = vmatpush2.bf16.xpose.msra.mxu0 0
      %1474 = vmatprep.subr.bf16.mxu0 0
      %1475 = vmatpush2.bf16.xpose.msra.mxu0 0
      %1476 = vmatprep.subr.bf16.mxu0 0
      %1477 = vmatpush2.bf16.xpose.msra.mxu0 0
      %1478 = vmatprep.subr.bf16.mxu0 0
      %1479 = vmatpush2.bf16.xpose.msra.mxu0 0
      %1480 = vmatprep.subr.bf16.mxu0 0
      %1481 = vmatpush2.bf16.xpose.msra.mxu0 0
      %1482 = vmatprep.subr.bf16.mxu0 0
      %1483 = vmatpush2.bf16.xpose.msra.mxu0 0
      %1484 = vmatprep.mubr.bf16.mxu0 0
      %1485 = vmatmul.mubr.bf16.gmra.mxu0 %v1447
      %v1486 = vpop.f32.mrf.mxu0
      %v1487 = vadd.f32 0.0, %v1486
      %v1488 = vpop.f32.mrf.mxu0
      %v1489 = vpop.f32.mrf.mxu0
      %v1490 = vpop.f32.mrf.mxu0
      %1491 = vdwg.mxu0
      %v1492 = vmul.f32 %v1487, 0.25
      %vm1493 = vcmask 46080
      %v1494 = vsel %vm1493, %v1492, -inf
      %1495 = vmax.xlane.f32.xlu0 %v1494
      %v1496 = vpop.xlane.xlu0 %1495
      %v1497 = vsub.f32 %v1492, %v1496
      %v1498 = vmul.f32 %v1497, 1.442695
      %v1499 = vpow.pop %v1498
      %v1500 = vsel %vm1493, %v1499, 0.0
      %1501 = vadd.xlane.f32.xlu0 %v1500
      %v1502 = vpop.xlane.xlu0 %1501
      %v1503 = vrcp.pop %v1502
      %v1504 = vmul.f32 %v1499, %v1503
      %v1505 = vpack.c.bf16 %v1504, %v1504
      %1506 = vrot.lane.b32.xlu0 %v1441, 64
      %v1507 = vpop.permute.xlu0 %1506
      %vm1508 = vcmask 48128
      %v1510 = vsel %vm1508, %v1505, 0
      %vm1512 = vcmask 1042432
      %v1514 = vsel %vm1512, %v1507, 0
      %1516 = vmatprep.subr.bf16.mxu0 0
      %1517 = vmatpush1.bf16.msra.mxu0 0
      %1518 = vmatprep.subr.bf16.mxu0 0
      %1519 = vmatpush1.bf16.msra.mxu0 0
      %1520 = vmatprep.subr.bf16.mxu0 0
      %1521 = vmatpush1.bf16.msra.mxu0 0
      %1522 = vmatprep.subr.bf16.mxu0 0
      %1523 = vmatpush1.bf16.msra.mxu0 0
      %1524 = vmatprep.subr.bf16.mxu0 0
      %1525 = vmatpush1.bf16.msra.mxu0 0
      %1526 = vmatprep.subr.bf16.mxu0 0
      %1527 = vmatpush1.bf16.msra.mxu0 0
      %1528 = vmatprep.subr.bf16.mxu0 0
      %1529 = vmatpush1.bf16.msra.mxu0 0
      %1530 = vmatprep.subr.bf16.mxu0 0
      %1531 = vmatpush1.bf16.msra.mxu0 %v1514
      %1532 = vmatprep.subr.bf16.mxu0 0
      %1533 = vmatpush2.bf16.msra.mxu0 0
      %1534 = vmatprep.subr.bf16.mxu0 0
      %1535 = vmatpush2.bf16.msra.mxu0 0
      %1536 = vmatprep.subr.bf16.mxu0 0
      %1537 = vmatpush2.bf16.msra.mxu0 0
      %1538 = vmatprep.subr.bf16.mxu0 0
      %1539 = vmatpush2.bf16.msra.mxu0 0
      %1540 = vmatprep.subr.bf16.mxu0 0
      %1541 = vmatpush2.bf16.msra.mxu0 0
      %1542 = vmatprep.subr.bf16.mxu0 0
      %1543 = vmatpush2.bf16.msra.mxu0 0
      %1544 = vmatprep.subr.bf16.mxu0 0
      %1545 = vmatpush2.bf16.msra.mxu0 0
      %1546 = vmatprep.subr.bf16.mxu0 0
      %1547 = vmatpush2.bf16.msra.mxu0 0
      %1548 = vmatprep.mubr.bf16.mxu0 0
      %1549 = vmatmul.mubr.bf16.gmra.mxu0 %v1510
      %v1550 = vpop.f32.mrf.mxu0
      %v1551 = vadd.f32 0.0, %v1550
      %v1552 = vpop.f32.mrf.mxu0
      %v1553 = vpop.f32.mrf.mxu0
      %v1554 = vpop.f32.mrf.mxu0
      %1555 = vdwg.mxu0
      %1556 = vrot.lane.b32.xlu0 %v1441, 112
      %v1557 = vpop.permute.xlu0 %1556
      %1558 = vrot.lane.b32.xlu0 %v1441, 80
      %v1559 = vpop.permute.xlu0 %1558
      %v1561 = vsel %vm1445, %v1557, 0
      %v1564 = vsel %vm1445, %v1559, 0
      %1566 = vmatprep.subr.bf16.mxu0 0
      %1567 = vmatpush1.bf16.xpose.msra.mxu0 0
      %1568 = vmatprep.subr.bf16.mxu0 0
      %1569 = vmatpush1.bf16.xpose.msra.mxu0 0
      %1570 = vmatprep.subr.bf16.mxu0 0
      %1571 = vmatpush1.bf16.xpose.msra.mxu0 0
      %1572 = vmatprep.subr.bf16.mxu0 0
      %1573 = vmatpush1.bf16.xpose.msra.mxu0 0
      %1574 = vmatprep.subr.bf16.mxu0 0
      %1575 = vmatpush1.bf16.xpose.msra.mxu0 0
      %1576 = vmatprep.subr.bf16.mxu0 0
      %1577 = vmatpush1.bf16.xpose.msra.mxu0 0
      %1578 = vmatprep.subr.bf16.mxu0 0
      %1579 = vmatpush1.bf16.xpose.msra.mxu0 0
      %1580 = vmatprep.subr.bf16.mxu0 0
      %1581 = vmatpush1.bf16.xpose.msra.mxu0 %v1564
      %1582 = vmatprep.subr.bf16.mxu0 0
      %1583 = vmatpush2.bf16.xpose.msra.mxu0 0
      %1584 = vmatprep.subr.bf16.mxu0 0
      %1585 = vmatpush2.bf16.xpose.msra.mxu0 0
      %1586 = vmatprep.subr.bf16.mxu0 0
      %1587 = vmatpush2.bf16.xpose.msra.mxu0 0
      %1588 = vmatprep.subr.bf16.mxu0 0
      %1589 = vmatpush2.bf16.xpose.msra.mxu0 0
      %1590 = vmatprep.subr.bf16.mxu0 0
      %1591 = vmatpush2.bf16.xpose.msra.mxu0 0
      %1592 = vmatprep.subr.bf16.mxu0 0
      %1593 = vmatpush2.bf16.xpose.msra.mxu0 0
      %1594 = vmatprep.subr.bf16.mxu0 0
      %1595 = vmatpush2.bf16.xpose.msra.mxu0 0
      %1596 = vmatprep.subr.bf16.mxu0 0
      %1597 = vmatpush2.bf16.xpose.msra.mxu0 0
      %1598 = vmatprep.mubr.bf16.mxu0 0
      %1599 = vmatmul.mubr.bf16.gmra.mxu0 %v1561
      %v1600 = vpop.f32.mrf.mxu0
      %v1601 = vadd.f32 0.0, %v1600
      %v1602 = vpop.f32.mrf.mxu0
      %v1603 = vpop.f32.mrf.mxu0
      %v1604 = vpop.f32.mrf.mxu0
      %1605 = vdwg.mxu0
      %v1606 = vmul.f32 %v1601, 0.25
      %v1607 = vsel %vm1493, %v1606, -inf
      %1608 = vmax.xlane.f32.xlu0 %v1607
      %v1609 = vpop.xlane.xlu0 %1608
      %v1610 = vsub.f32 %v1606, %v1609
      %v1611 = vmul.f32 %v1610, 1.442695
      %v1612 = vpow.pop %v1611
      %v1613 = vsel %vm1493, %v1612, 0.0
      %1614 = vadd.xlane.f32.xlu0 %v1613
      %v1615 = vpop.xlane.xlu0 %1614
      %v1616 = vrcp.pop %v1615
      %v1617 = vmul.f32 %v1612, %v1616
      %v1618 = vpack.c.bf16 %v1617, %v1617
      %1619 = vrot.lane.b32.xlu0 %v1441, 48
      %v1620 = vpop.permute.xlu0 %1619
      %v1622 = vsel %vm1508, %v1618, 0
      %v1625 = vsel %vm1512, %v1620, 0
      %1627 = vmatprep.subr.bf16.mxu0 0
      %1628 = vmatpush1.bf16.msra.mxu0 0
      %1629 = vmatprep.subr.bf16.mxu0 0
      %1630 = vmatpush1.bf16.msra.mxu0 0
      %1631 = vmatprep.subr.bf16.mxu0 0
      %1632 = vmatpush1.bf16.msra.mxu0 0
      %1633 = vmatprep.subr.bf16.mxu0 0
      %1634 = vmatpush1.bf16.msra.mxu0 0
      %1635 = vmatprep.subr.bf16.mxu0 0
      %1636 = vmatpush1.bf16.msra.mxu0 0
      %1637 = vmatprep.subr.bf16.mxu0 0
      %1638 = vmatpush1.bf16.msra.mxu0 0
      %1639 = vmatprep.subr.bf16.mxu0 0
      %1640 = vmatpush1.bf16.msra.mxu0 0
      %1641 = vmatprep.subr.bf16.mxu0 0
      %1642 = vmatpush1.bf16.msra.mxu0 %v1625
      %1643 = vmatprep.subr.bf16.mxu0 0
      %1644 = vmatpush2.bf16.msra.mxu0 0
      %1645 = vmatprep.subr.bf16.mxu0 0
      %1646 = vmatpush2.bf16.msra.mxu0 0
      %1647 = vmatprep.subr.bf16.mxu0 0
      %1648 = vmatpush2.bf16.msra.mxu0 0
      %1649 = vmatprep.subr.bf16.mxu0 0
      %1650 = vmatpush2.bf16.msra.mxu0 0
      %1651 = vmatprep.subr.bf16.mxu0 0
      %1652 = vmatpush2.bf16.msra.mxu0 0
      %1653 = vmatprep.subr.bf16.mxu0 0
      %1654 = vmatpush2.bf16.msra.mxu0 0
      %1655 = vmatprep.subr.bf16.mxu0 0
      %1656 = vmatpush2.bf16.msra.mxu0 0
      %1657 = vmatprep.subr.bf16.mxu0 0
      %1658 = vmatpush2.bf16.msra.mxu0 0
      %1659 = vmatprep.mubr.bf16.mxu0 0
      %1660 = vmatmul.mubr.bf16.gmra.mxu0 %v1622
      %v1661 = vpop.f32.mrf.mxu0
      %v1662 = vadd.f32 0.0, %v1661
      %v1663 = vpop.f32.mrf.mxu0
      %v1664 = vpop.f32.mrf.mxu0
      %v1665 = vpop.f32.mrf.mxu0
      %1666 = vdwg.mxu0
      %1668 = vrot.lane.b32.xlu0 %v1662, 16
      %v1669 = vpop.permute.xlu0 %1668
      %v1671 = vsel %vm1445, %v1551, %v1669
      %v1672 = vpack.c.bf16 %v1671, %v1671
      %v1673 = vld [vmem:[%s775] sm:$0xf]
      %v1674 = vld [vmem:[%s775 + $0x4] sm:$0xf]
      %v1675 = vld [vmem:[%s775 + $0x8] sm:$0xf]
      %v1676 = vld [vmem:[%s775 + $0xc] sm:$0xf]
      %v1677 = vld [vmem:[%s778] sm:$0x1]
      %v1679 = vlaneseq
      %v1680 = vshrl.u32 %v1679, 7
      %v1681 = vsub.s32 0, %v1680
      %v1682 = vrot.slane %v1677, %v1681
      %v1688 = vunpack.c.l.b16 %v1673
      %v1689 = vunpack.c.l.b16 %v1674
      %v1690 = vunpack.c.l.b16 %v1675
      %v1691 = vunpack.c.l.b16 %v1676
      %v1692 = vpack.c.b16 %v1689, %v1688
      %v1693 = vpack.c.b16 %v1691, %v1690
      %v1697 = vsel %vm1397, %v1672, 0
      %1699 = vmatprep.subr.bf16.mxu0 0
      %1700 = vmatpush1.bf16.msra.mxu0 0
      %1701 = vmatprep.subr.bf16.mxu0 0
      %1702 = vmatpush1.bf16.msra.mxu0 0
      %1703 = vmatprep.subr.bf16.mxu0 0
      %1704 = vmatpush1.bf16.msra.mxu0 0
      %1705 = vmatprep.subr.bf16.mxu0 0
      %1706 = vmatpush1.bf16.msra.mxu0 0
      %1707 = vmatprep.subr.bf16.mxu0 0
      %1708 = vmatpush1.bf16.msra.mxu0 0
      %1709 = vmatprep.subr.bf16.mxu0 0
      %1710 = vmatpush1.bf16.msra.mxu0 0
      %1711 = vmatprep.subr.bf16.mxu0 0
      %1712 = vmatpush1.bf16.msra.mxu0 %v1693
      %1713 = vmatprep.subr.bf16.mxu0 0
      %1714 = vmatpush1.bf16.msra.mxu0 %v1692
      %1715 = vmatprep.subr.bf16.mxu0 0
      %1716 = vmatpush2.bf16.msra.mxu0 0
      %1717 = vmatprep.subr.bf16.mxu0 0
      %1718 = vmatpush2.bf16.msra.mxu0 0
      %1719 = vmatprep.subr.bf16.mxu0 0
      %1720 = vmatpush2.bf16.msra.mxu0 0
      %1721 = vmatprep.subr.bf16.mxu0 0
      %1722 = vmatpush2.bf16.msra.mxu0 0
      %1723 = vmatprep.subr.bf16.mxu0 0
      %1724 = vmatpush2.bf16.msra.mxu0 0
      %1725 = vmatprep.subr.bf16.mxu0 0
      %1726 = vmatpush2.bf16.msra.mxu0 0
      %1727 = vmatprep.subr.bf16.mxu0 0
      %1728 = vmatpush2.bf16.msra.mxu0 0
      %1729 = vmatprep.subr.bf16.mxu0 0
      %1730 = vmatpush2.bf16.msra.mxu0 0
      %1731 = vmatprep.mubr.bf16.mxu0 0
      %1732 = vmatmul.mubr.bf16.gmra.mxu0 %v1697
      %v1733 = vpop.f32.mrf.mxu0
      %v1734 = vadd.f32 %v1682, %v1733
      %v1735 = vpop.f32.mrf.mxu0
      %v1736 = vpop.f32.mrf.mxu0
      %v1737 = vpop.f32.mrf.mxu0
      %1738 = vdwg.mxu0
      %v1739 = vadd.f32 %v1341, %v1734
      %v1740 = vld [vmem:[%s781] sm:$0x1]
      %v1741 = vld [vmem:[%s784] sm:$0x1]
      %v1742 = vsel %vm1344, %v1739, 0.0
      %1743 = vadd.xlane.f32.xlu0 %v1742
      %v1744 = vpop.xlane.xlu0 %1743
      %v1745 = vmul.f32 %v1744, %v1348
      %v1746 = vsub.f32 %v1739, %v1745
      %v1747 = vmul.f32 %v1746, %v1746
      %v1748 = vsel %vm1344, %v1747, 0.0
      %1749 = vadd.xlane.f32.xlu0 %v1748
      %v1750 = vpop.xlane.xlu0 %1749
      %v1751 = vmul.f32 %v1750, %v1348
      %v1752 = vadd.f32 %v1751, 1e-12
      %v1753 = vrsqrt.pop %v1752
      %v1754 = vmul.f32 %v1746, %v1753
      %v1756 = vlaneseq
      %v1757 = vshrl.u32 %v1756, 7
      %v1758 = vsub.s32 0, %v1757
      %v1759 = vrot.slane %v1740, %v1758
      %v1761 = vmul.f32 %v1754, %v1759
      %v1763 = vlaneseq
      %v1764 = vshrl.u32 %v1763, 7
      %v1765 = vsub.s32 0, %v1764
      %v1766 = vrot.slane %v1741, %v1765
      %v1768 = vadd.f32 %v1761, %v1766
      %v1769 = vpack.c.bf16 %v1768, %v1768
      %v1770 = vld [vmem:[%s789] sm:$0xf]
      %v1771 = vld [vmem:[%s789 + $0x4] sm:$0xf]
      %v1772 = vld [vmem:[%s789 + $0x8] sm:$0xf]
      %v1773 = vld [vmem:[%s789 + $0xc] sm:$0xf]
      %v1774 = vld [vmem:[%s792] sm:$0x1]
      %v1776 = vlaneseq
      %v1777 = vshrl.u32 %v1776, 7
      %v1778 = vsub.s32 0, %v1777
      %v1779 = vrot.slane %v1774, %v1778
      %v1785 = vunpack.c.l.b16 %v1770
      %v1786 = vunpack.c.l.b16 %v1771
      %v1787 = vunpack.c.l.b16 %v1772
      %v1788 = vunpack.c.l.b16 %v1773
      %v1789 = vpack.c.b16 %v1786, %v1785
      %v1790 = vpack.c.b16 %v1788, %v1787
      %v1794 = vsel %vm1397, %v1769, 0
      %1796 = vmatprep.subr.bf16.mxu0 0
      %1797 = vmatpush1.bf16.msra.mxu0 0
      %1798 = vmatprep.subr.bf16.mxu0 0
      %1799 = vmatpush1.bf16.msra.mxu0 0
      %1800 = vmatprep.subr.bf16.mxu0 0
      %1801 = vmatpush1.bf16.msra.mxu0 0
      %1802 = vmatprep.subr.bf16.mxu0 0
      %1803 = vmatpush1.bf16.msra.mxu0 0
      %1804 = vmatprep.subr.bf16.mxu0 0
      %1805 = vmatpush1.bf16.msra.mxu0 0
      %1806 = vmatprep.subr.bf16.mxu0 0
      %1807 = vmatpush1.bf16.msra.mxu0 0
      %1808 = vmatprep.subr.bf16.mxu0 0
      %1809 = vmatpush1.bf16.msra.mxu0 %v1790
      %1810 = vmatprep.subr.bf16.mxu0 0
      %1811 = vmatpush1.bf16.msra.mxu0 %v1789
      %1812 = vmatprep.subr.bf16.mxu0 0
      %1813 = vmatpush2.bf16.msra.mxu0 0
      %1814 = vmatprep.subr.bf16.mxu0 0
      %1815 = vmatpush2.bf16.msra.mxu0 0
      %1816 = vmatprep.subr.bf16.mxu0 0
      %1817 = vmatpush2.bf16.msra.mxu0 0
      %1818 = vmatprep.subr.bf16.mxu0 0
      %1819 = vmatpush2.bf16.msra.mxu0 0
      %1820 = vmatprep.subr.bf16.mxu0 0
      %1821 = vmatpush2.bf16.msra.mxu0 0
      %1822 = vmatprep.subr.bf16.mxu0 0
      %1823 = vmatpush2.bf16.msra.mxu0 0
      %1824 = vmatprep.subr.bf16.mxu0 0
      %1825 = vmatpush2.bf16.msra.mxu0 0
      %1826 = vmatprep.subr.bf16.mxu0 0
      %1827 = vmatpush2.bf16.msra.mxu0 0
      %1828 = vmatprep.mubr.bf16.mxu0 0
      %1829 = vmatmul.mubr.bf16.gmra.mxu0 %v1794
      %v1830 = vpop.f32.mrf.mxu0
      %v1831 = vadd.f32 %v1779, %v1830
      %v1832 = vpop.f32.mrf.mxu0
      %v1833 = vpop.f32.mrf.mxu0
      %v1834 = vpop.f32.mrf.mxu0
      %1835 = vdwg.mxu0
      %v1836 = vmul.f32 %v1831, 0.5
      %v1837 = vmul.f32 %v1831, 0.044715
      %v1838 = vmul.f32 %v1837, %v1831
      %v1839 = vmul.f32 %v1838, %v1831
      %v1840 = vadd.f32 %v1831, %v1839
      %v1841 = vmul.f32 %v1840, 0.7978846
      %v1842 = vtanh.pop %v1841
      %v1843 = vadd.f32 %v1842, 1.0
      %v1844 = vmul.f32 %v1836, %v1843
      %v1845 = vpack.c.bf16 %v1844, %v1844
      %v1846 = vld [vmem:[%s797] sm:$0xf]
      %v1847 = vld [vmem:[%s797 + $0x4] sm:$0xf]
      %v1848 = vld [vmem:[%s797 + $0x8] sm:$0xf]
      %v1849 = vld [vmem:[%s797 + $0xc] sm:$0xf]
      %v1850 = vld [vmem:[%s797 + $0x10] sm:$0xf]
      %v1851 = vld [vmem:[%s797 + $0x14] sm:$0xf]
      %v1852 = vld [vmem:[%s797 + $0x18] sm:$0xf]
      %v1853 = vld [vmem:[%s797 + $0x1c] sm:$0xf]
      %v1862 = vunpack.c.l.b16 %v1846
      %v1863 = vunpack.c.l.b16 %v1847
      %v1864 = vunpack.c.l.b16 %v1848
      %v1865 = vunpack.c.l.b16 %v1849
      %v1866 = vunpack.c.l.b16 %v1850
      %v1867 = vunpack.c.l.b16 %v1851
      %v1868 = vunpack.c.l.b16 %v1852
      %v1869 = vunpack.c.l.b16 %v1853
      %v1870 = vpack.c.b16 %v1863, %v1862
      %v1871 = vpack.c.b16 %v1865, %v1864
      %v1872 = vpack.c.b16 %v1867, %v1866
      %v1873 = vpack.c.b16 %v1869, %v1868
      %vm1878 = vcmask 523264
      %v1880 = vsel %vm1878, %v1845, 0
      %1882 = vmatprep.subr.bf16.mxu0 0
      %1883 = vmatpush1.bf16.msra.mxu0 0
      %1884 = vmatprep.subr.bf16.mxu0 0
      %1885 = vmatpush1.bf16.msra.mxu0 0
      %1886 = vmatprep.subr.bf16.mxu0 0
      %1887 = vmatpush1.bf16.msra.mxu0 0
      %1888 = vmatprep.subr.bf16.mxu0 0
      %1889 = vmatpush1.bf16.msra.mxu0 0
      %1890 = vmatprep.subr.bf16.mxu0 0
      %1891 = vmatpush1.bf16.msra.mxu0 %v1873
      %1892 = vmatprep.subr.bf16.mxu0 0
      %1893 = vmatpush1.bf16.msra.mxu0 %v1872
      %1894 = vmatprep.subr.bf16.mxu0 0
      %1895 = vmatpush1.bf16.msra.mxu0 %v1871
      %1896 = vmatprep.subr.bf16.mxu0 0
      %1897 = vmatpush1.bf16.msra.mxu0 %v1870
      %1898 = vmatprep.subr.bf16.mxu0 0
      %1899 = vmatpush2.bf16.msra.mxu0 0
      %1900 = vmatprep.subr.bf16.mxu0 0
      %1901 = vmatpush2.bf16.msra.mxu0 0
      %1902 = vmatprep.subr.bf16.mxu0 0
      %1903 = vmatpush2.bf16.msra.mxu0 0
      %1904 = vmatprep.subr.bf16.mxu0 0
      %1905 = vmatpush2.bf16.msra.mxu0 0
      %1906 = vmatprep.subr.bf16.mxu0 0
      %1907 = vmatpush2.bf16.msra.mxu0 0
      %1908 = vmatprep.subr.bf16.mxu0 0
      %1909 = vmatpush2.bf16.msra.mxu0 0
      %1910 = vmatprep.subr.bf16.mxu0 0
      %1911 = vmatpush2.bf16.msra.mxu0 0
      %1912 = vmatprep.subr.bf16.mxu0 0
      %1913 = vmatpush2.bf16.msra.mxu0 0
      %1914 = vmatprep.mubr.bf16.mxu0 0
      %1915 = vmatmul.mubr.bf16.gmra.mxu0 %v1880
      %v1916 = vpop.f32.mrf.mxu0
      %v1917 = vadd.f32 0.0, %v1916
      %v1918 = vpop.f32.mrf.mxu0
      %v1919 = vpop.f32.mrf.mxu0
      %v1920 = vpop.f32.mrf.mxu0
      %1921 = vdwg.mxu0
      %v1922 = vadd.f32 %v1739, %v1917
      %v1923 = vld [vmem:[%s800] sm:$0x1]
      %v1925 = vlaneseq
      %v1926 = vshrl.u32 %v1925, 7
      %v1927 = vsub.s32 0, %v1926
      %v1928 = vrot.slane %v1923, %v1927
      %v1930 = vadd.f32 %v1922, %v1928
      %1931 = vst.msk [vmem:[#allocation2] sm:$0x3f] %vm1344, %v1930
      %p1932 = scmp.eq.s32.totalorder %s35, 1
      // Predicated region
      $region101: #{deit_forward.1} parent=95 // pred_check
        %p1933 = pneg %p1932
      $region102: #{deit_forward.1} parent=95 // pred_check_branch
        %1935 = sbr.rel (%p1933) target = $region104
      $region103: #{deit_forward.1} parent=95 // pred_region
        %v1936 = vld [vmem:[%s15] sm:$0x1]
        %v1937 = vld [vmem:[%s16] sm:$0x1]
        %vm1938 = vcmask 253952
        %v1939 = vsel %vm1938, %v1930, 0.0
        %1940 = vadd.xlane.f32.xlu0 %v1939
        %v1941 = vpop.xlane.xlu0 %1940
        %v1942 = vmul.f32 %v1941, %v1348
        %v1943 = vsub.f32 %v1930, %v1942
        %v1944 = vmul.f32 %v1943, %v1943
        %v1945 = vsel %vm1938, %v1944, 0.0
        %1946 = vadd.xlane.f32.xlu0 %v1945
        %v1947 = vpop.xlane.xlu0 %1946
        %v1948 = vmul.f32 %v1947, %v1348
        %v1949 = vadd.f32 %v1948, 1e-12
        %v1950 = vrsqrt.pop %v1949
        %v1951 = vmul.f32 %v1943, %v1950
        %v1952 = vmul.f32 %v1951, %v1936
        %v1953 = vadd.f32 %v1952, %v1937
        %v1954 = vpack.c.bf16 %v1953, %v1953
        %v1955 = vld [vmem:[%s17] sm:$0xff]
        %v1956 = vld [vmem:[%s17 + $0x8] sm:$0xff]
        %v1957 = vld [vmem:[%s17 + $0x10] sm:$0xff]
        %v1958 = vld [vmem:[%s17 + $0x18] sm:$0xff]
        %v1959 = vld [vmem:[%s17 + $0x20] sm:$0xff]
        %v1960 = vld [vmem:[%s17 + $0x28] sm:$0xff]
        %v1961 = vld [vmem:[%s17 + $0x30] sm:$0xff]
        %v1962 = vld [vmem:[%s17 + $0x38] sm:$0xff]
        %v1963 = vld [vmem:[%s18] sm:$0xf]
        %v1972 = vunpack.c.l.b16 %v1955
        %v1973 = vunpack.c.h.b16 %v1955
        %v1974 = vunpack.c.l.b16 %v1956
        %v1975 = vunpack.c.h.b16 %v1956
        %v1976 = vunpack.c.l.b16 %v1957
        %v1977 = vunpack.c.h.b16 %v1957
        %v1978 = vunpack.c.l.b16 %v1958
        %v1979 = vunpack.c.h.b16 %v1958
        %v1980 = vunpack.c.l.b16 %v1959
        %v1981 = vunpack.c.h.b16 %v1959
        %v1982 = vunpack.c.l.b16 %v1960
        %v1983 = vunpack.c.h.b16 %v1960
        %v1984 = vunpack.c.l.b16 %v1961
        %v1985 = vunpack.c.h.b16 %v1961
        %v1986 = vunpack.c.l.b16 %v1962
        %v1987 = vunpack.c.h.b16 %v1962
        %v1988 = vpack.c.b16 %v1976, %v1972
        %v1989 = vpack.c.b16 %v1977, %v1973
        %v1990 = vpack.c.b16 %v1978, %v1974
        %v1991 = vpack.c.b16 %v1979, %v1975
        %v1992 = vpack.c.b16 %v1984, %v1980
        %v1993 = vpack.c.b16 %v1985, %v1981
        %v1994 = vpack.c.b16 %v1986, %v1982
        %v1995 = vpack.c.b16 %v1987, %v1983
        %v2005 = vlaneseq
        %v2006 = vshrl.u32 %v2005, 7
        %v2007 = vsub.s32 0, %v2006
        %v2008 = vrot.slane %v1963, %v2007
        %v2009 = vlaneseq
        %v2010 = vshrl.u32 %v2009, 7
        %v2011 = vsub.s32 1, %v2010
        %v2012 = vrot.slane %v1963, %v2011
        %v2013 = vlaneseq
        %v2014 = vshrl.u32 %v2013, 7
        %v2015 = vsub.s32 2, %v2014
        %v2016 = vrot.slane %v1963, %v2015
        %v2017 = vlaneseq
        %v2018 = vshrl.u32 %v2017, 7
        %v2019 = vsub.s32 3, %v2018
        %v2020 = vrot.slane %v1963, %v2019
        %v2026 = vsel %vm1397, %v1954, 0
        %2028 = vmatprep.subr.bf16.mxu0 0
        %2029 = vmatpush1.bf16.msra.mxu0 0
        %2030 = vmatprep.subr.bf16.mxu0 0
        %2031 = vmatpush1.bf16.msra.mxu0 0
        %2032 = vmatprep.subr.bf16.mxu0 0
        %2033 = vmatpush1.bf16.msra.mxu0 0
        %2034 = vmatprep.subr.bf16.mxu0 0
        %2035 = vmatpush1.bf16.msra.mxu0 0
        %2036 = vmatprep.subr.bf16.mxu0 0
        %2037 = vmatpush1.bf16.msra.mxu0 0
        %2038 = vmatprep.subr.bf16.mxu0 0
        %2039 = vmatpush1.bf16.msra.mxu0 0
        %2040 = vmatprep.subr.bf16.mxu0 %v1993
        %2041 = vmatpush1.bf16.msra.mxu0 %v1992
        %2042 = vmatprep.subr.bf16.mxu0 %v1989
        %2043 = vmatpush1.bf16.msra.mxu0 %v1988
        %2044 = vmatprep.subr.bf16.mxu0 0
        %2045 = vmatpush2.bf16.msra.mxu0 0
        %2046 = vmatprep.subr.bf16.mxu0 0
        %2047 = vmatpush2.bf16.msra.mxu0 0
        %2048 = vmatprep.subr.bf16.mxu0 0
        %2049 = vmatpush2.bf16.msra.mxu0 0
        %2050 = vmatprep.subr.bf16.mxu0 0
        %2051 = vmatpush2.bf16.msra.mxu0 0
        %2052 = vmatprep.subr.bf16.mxu0 0
        %2053 = vmatpush2.bf16.msra.mxu0 0
        %2054 = vmatprep.subr.bf16.mxu0 0
        %2055 = vmatpush2.bf16.msra.mxu0 0
        %2056 = vmatprep.subr.bf16.mxu0 0
        %2057 = vmatpush2.bf16.msra.mxu0 0
        %2058 = vmatprep.subr.bf16.mxu0 0
        %2059 = vmatpush2.bf16.msra.mxu0 0
        %2060 = vmatprep.mubr.bf16.mxu0 0
        %2061 = vmatmul.mubr.bf16.gmra.mxu0 %v2026
        %v2062 = vpop.f32.mrf.mxu0
        %v2063 = vadd.f32 %v2008, %v2062
        %v2064 = vpop.f32.mrf.mxu0
        %v2065 = vadd.f32 %v2012, %v2064
        %v2066 = vpop.f32.mrf.mxu0
        %v2067 = vpop.f32.mrf.mxu0
        %2068 = vdwg.mxu0
        %2069 = vmatprep.subr.bf16.mxu0 0
        %2070 = vmatpush1.bf16.msra.mxu0 0
        %2071 = vmatprep.subr.bf16.mxu0 0
        %2072 = vmatpush1.bf16.msra.mxu0 0
        %2073 = vmatprep.subr.bf16.mxu0 0
        %2074 = vmatpush1.bf16.msra.mxu0 0
        %2075 = vmatprep.subr.bf16.mxu0 0
        %2076 = vmatpush1.bf16.msra.mxu0 0
        %2077 = vmatprep.subr.bf16.mxu0 0
        %2078 = vmatpush1.bf16.msra.mxu0 0
        %2079 = vmatprep.subr.bf16.mxu0 0
        %2080 = vmatpush1.bf16.msra.mxu0 0
        %2081 = vmatprep.subr.bf16.mxu0 %v1995
        %2082 = vmatpush1.bf16.msra.mxu0 %v1994
        %2083 = vmatprep.subr.bf16.mxu0 %v1991
        %2084 = vmatpush1.bf16.msra.mxu0 %v1990
        %2085 = vmatprep.subr.bf16.mxu0 0
        %2086 = vmatpush2.bf16.msra.mxu0 0
        %2087 = vmatprep.subr.bf16.mxu0 0
        %2088 = vmatpush2.bf16.msra.mxu0 0
        %2089 = vmatprep.subr.bf16.mxu0 0
        %2090 = vmatpush2.bf16.msra.mxu0 0
        %2091 = vmatprep.subr.bf16.mxu0 0
        %2092 = vmatpush2.bf16.msra.mxu0 0
        %2093 = vmatprep.subr.bf16.mxu0 0
        %2094 = vmatpush2.bf16.msra.mxu0 0
        %2095 = vmatprep.subr.bf16.mxu0 0
        %2096 = vmatpush2.bf16.msra.mxu0 0
        %2097 = vmatprep.subr.bf16.mxu0 0
        %2098 = vmatpush2.bf16.msra.mxu0 0
        %2099 = vmatprep.subr.bf16.mxu0 0
        %2100 = vmatpush2.bf16.msra.mxu0 0
        %2101 = vmatprep.mubr.bf16.mxu0 0
        %2102 = vmatmul.mubr.bf16.gmra.mxu0 %v2026
        %v2103 = vpop.f32.mrf.mxu0
        %v2104 = vadd.f32 %v2016, %v2103
        %v2105 = vpop.f32.mrf.mxu0
        %v2106 = vadd.f32 %v2020, %v2105
        %v2107 = vpop.f32.mrf.mxu0
        %v2108 = vpop.f32.mrf.mxu0
        %2109 = vdwg.mxu0
        %v2114 = vcombine.low %v2063, %v2065
        %v2115 = vcombine.low %v2104, %v2106
        %v2117 = vunpack.c.l.s4 1966171168
        %v2118 = vunpack.c.0.s8 %v2117
        %v2119 = vlaneseq
        %v2120 = vshrl.u32 %v2119, 7
        %v2121 = vsub.s32 %v2118, %v2120
        %v2122 = vrot.slane %v2114, %v2121
        %v2124 = vunpack.c.l.s4 1966171168
        %v2125 = vunpack.c.0.s8 %v2124
        %v2126 = vlaneseq
        %v2127 = vshrl.u32 %v2126, 7
        %v2128 = vsub.s32 %v2125, %v2127
        %v2129 = vrot.slane %v2115, %v2128
        %v2130 = vcombine.low %v2122, %v2129
        %v2132 = vunpack.c.l.s4 1966171168
        %v2133 = vunpack.c.0.s8 %v2132
        %v2134 = vlaneseq
        %v2135 = vshrl.u32 %v2134, 7
        %v2136 = vsub.s32 %v2133, %v2135
        %v2137 = vrot.slane %v2130, %v2136
        %v2139 = vlaneseq
        %vm2140 = vcmp.ge.s32.totalorder %v2139, 0
        %vm2141 = vcmp.lt.s32.totalorder %v2139, 512
        %vm2142 = vmand %vm2140, %vm2141
        %2143 = vst.msk [vmem:[%s804] sm:$0xf] %vm2142, %v2137
      $region104: #{deit_forward.1} parent=95 // pred_fallthru
        _
      %p2144 = scmp.lt.s32.totalorder %s34, 1
      %s2145 = scalar_select %p2144, %s34, 1
      %s2146 = smul.addr %s2145, 4
      %s2147 = scalar_lea.vmem %s19, %s2146
      // Predicated region
      $region105: #{deit_forward.1} parent=95 // pred_check
        %p2148 = pneg %p524
      $region106: #{deit_forward.1} parent=95 // pred_check_branch
        %2150 = sbr.rel (%p2148) target = $region108
      $region107: #{deit_forward.1} parent=95 // pred_region
        _
      $region108: #{deit_forward.1} parent=95 // pred_fallthru
        _
    $region96: #{deit_forward.1} parent=5 // pred_fallthru
      _
    %p2151 = scmp.le.s32.totalorder 2, %s25
    // Predicated region
    $region109: #{deit_forward.1} parent=5 // pred_check
      %p2152 = pneg %p2151
    $region110: #{deit_forward.1} parent=5 // pred_check_branch
      %2154 = sbr.rel (%p2152) target = $region112
    $region111: #{deit_forward.1} parent=5 // pred_region
      %s2155 = ssub.s32 %s25, 2
      // Predicated region
      $region113: #{deit_forward.1} parent=111 // pred_check
        %p2156 = pneg %p530
      $region114: #{deit_forward.1} parent=111 // pred_check_branch
        %2158 = sbr.rel (%p2156) target = $region116
      $region115: #{deit_forward.1} parent=111 // pred_region
        %p2159 = scmp.lt.s32.totalorder %s36, 1
        %s2160 = scalar_select %p2159, %s36, 1
        %s2161 = smul.addr %s2160, 4
        %s2162 = scalar_lea.vmem %s19, %s2161
      $region116: #{deit_forward.1} parent=111 // pred_fallthru
        _
    $region112: #{deit_forward.1} parent=5 // pred_fallthru
      _
  $region6: #{deit_forward.1} parent=0 // loop_footer
    %s29 = sadd.s32 1, %s25
  $region7: #{deit_forward.1} parent=0 // loop_footer_branch
    %24 = sbr.rel target = $region3
  $region8: #{deit_forward.1} parent=0 // loop_exit
    _

</llo_original>
